<compile_context>
chip_gen: v7x
topology: tpu7x:2x2x1
jax: 0.10.0
libtpu: 0.0.40
codegen_flags: <defaults>
</compile_context>

<pallas_src>
import jax
import jax.numpy as jnp
from jax import lax
from jax.experimental import pallas as pl
from jax.experimental.pallas import tpu as pltpu


def _round_up(x, m):
    return ((x + m - 1) // m) * m


def _cdiv(a, b):
    return -(-a // b)


# --------- stage 1: conv (as matmul) + bn1 + relu + fc + bn2 + relu ----------
def _hidden_kernel(x_ref, wc_ref, cb_ref, fw_ref, fb_ref, h_ref):
    # x: (tb, 400)  wc: (400, FCLp)  cb: (1, FCLp)  fw: (FCLp, d1)  fb: (1, d1)
    act = jnp.dot(x_ref[...], wc_ref[...], preferred_element_type=jnp.float32)
    act = jnp.maximum(act + cb_ref[...], 0.0)          # conv+bn0+bn1 folded, relu
    h = jnp.dot(act, fw_ref[...], preferred_element_type=jnp.float32)
    h_ref[...] = jnp.maximum(h + fb_ref[...], 0.0)     # fc+bn2 folded, relu


# --------- stage 2: score against an entity tile, bias + sigmoid -------------
def _score_kernel(h_ref, et_ref, b_ref, out_ref):
    # h: (Bp, d1) f32 resident; et: (d1, tn) bf16 streamed; b: (1, tn) f32
    logits = jnp.dot(h_ref[...].astype(et_ref.dtype), et_ref[...],
                     preferred_element_type=jnp.float32)
    out_ref[...] = jax.nn.sigmoid(logits + b_ref[...])


# --------- parameter-only precompute (hoisted out of the forward path) -------
def prepare_conve(P, *, fh, fw, tn_cap=4096, eps=1e-5):
    E, R = P["E"], P["R"]
    NE, d1 = E.shape
    OC = P["conv_w"].shape[0]
    OH, OW = 20 - fh + 1, 20 - fw + 1
    FCL = OC * OH * OW

    # ---- fold bn0 + bn1 into the conv weights (running stats, eval mode) ----
    g0, b0, m0, v0 = P["bn0"]
    s0 = g0 * lax.rsqrt(v0 + eps)
    t0 = b0 - m0 * s0
    s1 = P["bn1_g"] * lax.rsqrt(P["bn1_v"] + eps)
    w_eff = (s0 * P["conv_w"]) * s1[:, None, None, None]          # (OC,1,FH,FW)
    w_sum = P["conv_w"].sum(axis=(1, 2, 3))
    cb_eff = s1 * (P["conv_b"] + t0 * w_sum - P["bn1_m"]) + P["bn1_b"]

    # conv -> dense matmul weight (400, FCL) in NCHW flatten order, built by
    # applying the folded conv to the 400 one-hot 20x20 images (done ONCE).
    eye_img = jnp.eye(400, dtype=jnp.float32).reshape(400, 1, 20, 20)
    wc = lax.conv_general_dilated(
        eye_img, w_eff, (1, 1), "VALID",
        dimension_numbers=("NCHW", "OIHW", "NCHW"),
        precision=lax.Precision.HIGHEST).reshape(400, FCL)
    cbias = jnp.repeat(cb_eff, OH * OW)                            # (FCL,)

    # ---- fold bn2 into the fc weights ---------------------------------------
    s2 = P["bn2_g"] * lax.rsqrt(P["bn2_v"] + eps)
    fcw_eff = P["fc_w"].T * s2[None, :]                            # (FCL, d1)
    fcb_eff = s2 * (P["fc_b"] - P["bn2_m"]) + P["bn2_b"]           # (d1,)

    # ---- pad the FCL (contraction) dim to a lane-dense multiple of 128 ------
    FCLp = _round_up(FCL, 128)
    wc = jnp.pad(wc, ((0, 0), (0, FCLp - FCL)))
    cbias = jnp.pad(cbias, (0, FCLp - FCL))[None, :]
    fcw_eff = jnp.pad(fcw_eff, ((0, FCLp - FCL), (0, 0)))
    fcb_eff = fcb_eff[None, :]

    # ---- entity tiling: balanced tiles, <=4096, minimal dead columns --------
    NEp128 = _round_up(NE, 128)
    nt = _cdiv(NEp128, tn_cap)
    tn = _round_up(_cdiv(NEp128, nt), 128)
    NEp = nt * tn
    et = jnp.pad(E.T, ((0, 0), (0, NEp - NE))).astype(jnp.bfloat16)  # (d1, NEp)
    bent = jnp.pad(P["b"], (0, NEp - NE))[None, :].astype(jnp.float32)

    return dict(E=E, R=R, wc=wc, cbias=cbias, fcw=fcw_eff, fcb=fcb_eff,
                et=et, bent=bent, d1=d1, FCLp=FCLp, tn=tn, NEp=NEp, NE=NE)


# --------- per-call forward ---------------------------------------------------
def conve_pallas(e1_idx, r_idx, prep):
    d1, FCLp, tn, NEp, NE = (prep[k] for k in ("d1", "FCLp", "tn", "NEp", "NE"))
    B = e1_idx.shape[0]

    # glue: embedding gather + reshape + concat -> (B, 400), pad batch to 8s
    e1 = prep["E"][e1_idx].reshape(B, 10, 20)
    r = prep["R"][r_idx].reshape(B, 10, 20)
    x = jnp.concatenate([e1, r], axis=1).reshape(B, 400)

    Bp = _round_up(B, 8)
    nb = _cdiv(Bp, 256)                       # batch tiles (<= 256 rows each)
    tb = _round_up(_cdiv(Bp, nb), 8)
    Bp = nb * tb
    x = jnp.pad(x, ((0, Bp - B), (0, 0)))

    # ---- stage 1: hidden vector h (Bp, d1), tiled over batch ----------------
    h = pl.pallas_call(
        _hidden_kernel,
        out_shape=jax.ShapeDtypeStruct((Bp, d1), jnp.float32),
        grid_spec=pltpu.PrefetchScalarGridSpec(
            num_scalar_prefetch=0,
            grid=(nb,),
            in_specs=[pl.BlockSpec((tb, 400), lambda i: (i, 0)),    # x tile
                      pl.BlockSpec((400, FCLp), lambda i: (0, 0)),  # wc resident
                      pl.BlockSpec((1, FCLp), lambda i: (0, 0)),    # conv bias
                      pl.BlockSpec((FCLp, d1), lambda i: (0, 0)),   # fc weight
                      pl.BlockSpec((1, d1), lambda i: (0, 0))],     # fc bias
            out_specs=pl.BlockSpec((tb, d1), lambda i: (i, 0))),
        compiler_params=pltpu.CompilerParams(
            dimension_semantics=("parallel",),
            vmem_limit_bytes=32 * 1024 * 1024),
    )(x, prep["wc"], prep["cbias"], prep["fcw"], prep["fcb"])

    # ---- stage 2: score against all entities, tiled + parallel over NE ------
    out = pl.pallas_call(
        _score_kernel,
        out_shape=jax.ShapeDtypeStruct((Bp, NEp), jnp.float32),
        grid_spec=pltpu.PrefetchScalarGridSpec(
            num_scalar_prefetch=0,
            grid=(NEp // tn,),
            in_specs=[pl.BlockSpec((Bp, d1), lambda j: (0, 0)),   # h: resident
                      pl.BlockSpec((d1, tn), lambda j: (0, j)),   # E^T tile (bf16)
                      pl.BlockSpec((1, tn), lambda j: (0, j))],   # entity bias
            out_specs=pl.BlockSpec((Bp, tn), lambda j: (0, j))),
        compiler_params=pltpu.CompilerParams(
            dimension_semantics=("parallel",),
            vmem_limit_bytes=32 * 1024 * 1024),
        cost_estimate=pl.CostEstimate(
            flops=2 * Bp * d1 * NEp,
            transcendentals=Bp * NEp,
            bytes_accessed=2 * d1 * NEp + 4 * (Bp * d1 + NEp + Bp * NEp)),
    )(h, prep["et"], prep["bent"])

    return out[:B, :NE]


def conve_reference(e1_idx, r_idx, P, *, fh, fw):
    """Pure-JAX reference matching the PyTorch forward (eval mode)."""
    eps = 1e-5
    E, R = P["E"], P["R"]
    B = e1_idx.shape[0]
    e1 = E[e1_idx].reshape(B, 1, 10, 20)
    r = R[r_idx].reshape(B, 1, 10, 20)
    x = jnp.concatenate([e1, r], axis=2)             # (B, 1, 20, 20)
    g0, b0, m0, v0 = P["bn0"]
    x = (x - m0) * (g0 / jnp.sqrt(v0 + eps)) + b0
    x = lax.conv_general_dilated(
        x, P["conv_w"], (1, 1), "VALID",
        dimension_numbers=("NCHW", "OIHW", "NCHW"))
    x = x + P["conv_b"][None, :, None, None]
    x = (x - P["bn1_m"][None, :, None, None]) \
        * (P["bn1_g"] / jnp.sqrt(P["bn1_v"] + eps))[None, :, None, None] \
        + P["bn1_b"][None, :, None, None]
    x = jnp.maximum(x, 0.0)
    x = x.reshape(B, -1)
    x = x @ P["fc_w"].T + P["fc_b"]
    x = (x - P["bn2_m"]) * (P["bn2_g"] / jnp.sqrt(P["bn2_v"] + eps)) + P["bn2_b"]
    x = jnp.maximum(x, 0.0)
    x = x @ E.T + P["b"]
    return jax.nn.sigmoid(x)


if __name__ == "__main__":
    key = jax.random.PRNGKey(0)
    NE, NR = 32, 8                    # num entities / relations (small)
    d1 = d2 = 200                     # forced by .view(-1, 1, 10, 20)
    OC, FH, FW = 4, 3, 3              # out_channels, filter size
    B = 2
    fc_len = (20 - FH + 1) * (20 - FW + 1) * OC

    ks = jax.random.split(key, 12)

    def xavier_normal(k, shape):
        fan_out, fan_in = shape
        std = (2.0 / (fan_in + fan_out)) ** 0.5
        return std * jax.random.normal(k, shape, jnp.float32)

    P = dict(
        E=xavier_normal(ks[0], (NE, d1)),
        R=xavier_normal(ks[1], (NR, d2)),
        conv_w=0.1 * jax.random.normal(ks[2], (OC, 1, FH, FW), jnp.float32),
        conv_b=0.05 * jax.random.normal(ks[3], (OC,), jnp.float32),
        fc_w=0.05 * jax.random.normal(ks[4], (d1, fc_len), jnp.float32),
        fc_b=0.05 * jax.random.normal(ks[5], (d1,), jnp.float32),
        bn0=jnp.array([1.05, 0.02, 0.01, 0.9], jnp.float32),  # gamma,beta,mean,var
        bn1_g=1.0 + 0.1 * jax.random.normal(ks[6], (OC,), jnp.float32),
        bn1_b=0.05 * jax.random.normal(ks[7], (OC,), jnp.float32),
        bn1_m=0.05 * jax.random.normal(ks[8], (OC,), jnp.float32),
        bn1_v=1.0 + 0.1 * jax.random.uniform(ks[9], (OC,), jnp.float32),
        bn2_g=1.0 + 0.1 * jax.random.normal(ks[10], (d1,), jnp.float32),
        bn2_b=jnp.zeros((d1,), jnp.float32),
        bn2_m=jnp.zeros((d1,), jnp.float32),
        bn2_v=jnp.ones((d1,), jnp.float32),
        b=jnp.zeros((NE,), jnp.float32),              # entity bias (zeros, as in module)
    )

    k_e, k_r = jax.random.split(ks[11])
    e1_idx = jax.random.randint(k_e, (B,), 0, NE)
    r_idx = jax.random.randint(k_r, (B,), 0, NR)

    # Parameter-only precompute: run ONCE (model load), not per forward call.
    prep = prepare_conve(P, fh=FH, fw=FW)
    prep = jax.tree_util.tree_map(
        lambda a: jax.block_until_ready(a) if isinstance(a, jax.Array) else a, prep)

    out = conve_pallas(e1_idx, r_idx, prep)
    out = jax.block_until_ready(out)
    ref = conve_reference(e1_idx, r_idx, P, fh=FH, fw=FW)

    assert out.shape == (B, NE) and out.dtype == jnp.float32
    # Tolerance accounts for bf16 storage of E^T (f32 MXU accumulation).
    assert jnp.allclose(out, ref, rtol=3e-3, atol=3e-3), \
        float(jnp.max(jnp.abs(out - ref)))
    print("KERNEL_OK")
</pallas_src>

<mosaic_0001>
module attributes {stable_mosaic.version = 11 : i64} {
  func.func @_hidden_kernel(%arg0: i32, %arg1: memref<8x400xf32, #tpu.memory_space<vmem>>, %arg2: memref<400x1408xf32, #tpu.memory_space<vmem>>, %arg3: memref<1x1408xf32, #tpu.memory_space<vmem>>, %arg4: memref<1408x200xf32, #tpu.memory_space<vmem>>, %arg5: memref<1x200xf32, #tpu.memory_space<vmem>>, %arg6: memref<8x200xf32, #tpu.memory_space<vmem>>) attributes {dimension_semantics = [#tpu.dimension_semantics<parallel>], iteration_bounds = array<i64: 1>, scalar_prefetch = 0 : i64, scratch_operands = 0 : i64, tpu.core_type = #tpu.core_type<tc>, window_params = [{transform_indices = @transform_0, window_bounds = array<i64: 8, 400>}, {pipeline_mode = #tpu.pipeline_mode<synchronous>, transform_indices = @transform_1, window_bounds = array<i64: 400, 1408>}, {pipeline_mode = #tpu.pipeline_mode<synchronous>, transform_indices = @transform_2, window_bounds = array<i64: 1, 1408>}, {pipeline_mode = #tpu.pipeline_mode<synchronous>, transform_indices = @transform_3, window_bounds = array<i64: 1408, 200>}, {pipeline_mode = #tpu.pipeline_mode<synchronous>, transform_indices = @transform_4, window_bounds = array<i64: 1, 200>}, {transform_indices = @transform_5, window_bounds = array<i64: 8, 200>}]} {
    %c0 = arith.constant 0 : index
    %c0_0 = arith.constant 0 : index
    %0 = vector.load %arg1[%c0, %c0_0] : memref<8x400xf32, #tpu.memory_space<vmem>>, vector<8x400xf32>
    %c0_1 = arith.constant 0 : index
    %c0_2 = arith.constant 0 : index
    %1 = vector.load %arg2[%c0_1, %c0_2] : memref<400x1408xf32, #tpu.memory_space<vmem>>, vector<400x1408xf32>
    %cst = arith.constant dense<0.000000e+00> : vector<8x1408xf32>
    %2 = tpu.matmul %0, %1, %cst {dimension_numbers = #tpu.dot_dimension_numbers<[1], [0], [0], [1], [0, 0, 1, 1], [], []>} : vector<8x400xf32>, vector<400x1408xf32>, vector<8x1408xf32> -> vector<8x1408xf32>
    %c0_3 = arith.constant 0 : index
    %c0_4 = arith.constant 0 : index
    %3 = vector.load %arg3[%c0_3, %c0_4] : memref<1x1408xf32, #tpu.memory_space<vmem>>, vector<1x1408xf32>
    %4 = vector.broadcast %3 : vector<1x1408xf32> to vector<8x1408xf32>
    %5 = arith.addf %2, %4 : vector<8x1408xf32>
    %cst_5 = arith.constant 0.000000e+00 : f32
    %6 = vector.broadcast %cst_5 : f32 to vector<8x1408xf32>
    %7 = arith.maximumf %5, %6 : vector<8x1408xf32>
    %c0_6 = arith.constant 0 : index
    %c0_7 = arith.constant 0 : index
    %8 = vector.load %arg4[%c0_6, %c0_7] : memref<1408x200xf32, #tpu.memory_space<vmem>>, vector<1408x200xf32>
    %cst_8 = arith.constant dense<0.000000e+00> : vector<8x200xf32>
    %9 = tpu.matmul %7, %8, %cst_8 {dimension_numbers = #tpu.dot_dimension_numbers<[1], [0], [0], [1], [0, 0, 1, 1], [], []>} : vector<8x1408xf32>, vector<1408x200xf32>, vector<8x200xf32> -> vector<8x200xf32>
    %c0_9 = arith.constant 0 : index
    %c0_10 = arith.constant 0 : index
    %10 = vector.load %arg5[%c0_9, %c0_10] : memref<1x200xf32, #tpu.memory_space<vmem>>, vector<1x200xf32>
    %11 = vector.broadcast %10 : vector<1x200xf32> to vector<8x200xf32>
    %12 = arith.addf %9, %11 : vector<8x200xf32>
    %cst_11 = arith.constant 0.000000e+00 : f32
    %13 = vector.broadcast %cst_11 : f32 to vector<8x200xf32>
    %14 = arith.maximumf %12, %13 : vector<8x200xf32>
    %c0_12 = arith.constant 0 : index
    %c0_13 = arith.constant 0 : index
    %15 = vector.load %arg6[%c0_12, %c0_13] : memref<8x200xf32, #tpu.memory_space<vmem>>, vector<8x200xf32>
    tpu.vector_store %arg6[%c0_12, %c0_13], %14 {strides = array<i32>} : memref<8x200xf32, #tpu.memory_space<vmem>>, vector<8x200xf32>,
    return
  }
  func.func @transform_0(%arg0: i32) -> (i32, i32) {
    %c0_i32 = arith.constant 0 : i32
    %c0_i32_0 = arith.constant 0 : i32
    return %arg0, %c0_i32 : i32, i32
  }
  func.func @transform_1(%arg0: i32) -> (i32, i32) {
    %c0_i32 = arith.constant 0 : i32
    %c0_i32_0 = arith.constant 0 : i32
    %c0_i32_1 = arith.constant 0 : i32
    return %c0_i32, %c0_i32_0 : i32, i32
  }
  func.func @transform_2(%arg0: i32) -> (i32, i32) {
    %c0_i32 = arith.constant 0 : i32
    %c0_i32_0 = arith.constant 0 : i32
    %c0_i32_1 = arith.constant 0 : i32
    return %c0_i32, %c0_i32_0 : i32, i32
  }
  func.func @transform_3(%arg0: i32) -> (i32, i32) {
    %c0_i32 = arith.constant 0 : i32
    %c0_i32_0 = arith.constant 0 : i32
    %c0_i32_1 = arith.constant 0 : i32
    return %c0_i32, %c0_i32_0 : i32, i32
  }
  func.func @transform_4(%arg0: i32) -> (i32, i32) {
    %c0_i32 = arith.constant 0 : i32
    %c0_i32_0 = arith.constant 0 : i32
    %c0_i32_1 = arith.constant 0 : i32
    return %c0_i32, %c0_i32_0 : i32, i32
  }
  func.func @transform_5(%arg0: i32) -> (i32, i32) {
    %c0_i32 = arith.constant 0 : i32
    %c0_i32_0 = arith.constant 0 : i32
    return %arg0, %c0_i32 : i32, i32
  }
}

</mosaic_0001>

<llo_original>
// kernel: tpu_custom_call.1
$region0: #{tpu_custom_call.1}
  #allocation0 [shape = 'u32[]', space=smem, size = 0x4, offset = 0x4, fixed_abs, tag = 'smem constant byte address 0x4 - core index']
  #allocation1 [shape = 'u32[144,128]{1,0:T(1,128)}', space=vmem, size = 0x12000, scoped, tag = 'internal scratch']
  %s0 = inlined_call_operand.vmem [shape: f32[8,400], index: 0, kind: input, shape index: {}]
  %s1 = inlined_call_operand.vmem [shape: f32[400,1408], index: 1, kind: input, shape index: {}]
  %s2 = inlined_call_operand.vmem [shape: f32[1,1408], index: 2, kind: input, shape index: {}]
  %s3 = inlined_call_operand.vmem [shape: f32[1408,200], index: 3, kind: input, shape index: {}]
  %s4 = inlined_call_operand.vmem [shape: f32[1,200], index: 4, kind: input, shape index: {}]
  %s5 = inlined_call_operand.hbm [shape: f32[8,200], index: 5, kind: output, shape index: {}]
  %s6 = sld [smem:[#allocation0]]
  $region30: #{tpu_custom_call.1} parent=0
    _
  %s8 = ssub.s32 1, %s6
  %s9 = scalar_select 0, %s8, %s6
  $region1: #{tpu_custom_call.1} parent=0
    #allocation2 [shape = 'u8[8192]{0}', space=vmem, size = 0x2000, scoped, tag = 'output window, operand 0, single buffered']
    #allocation3 [shape = 's32[1]{0}', space=sflag, size = 0x4, scoped, tag = 'scoped memory for tpu_custom_call.1']
    %10 = vsyncpa [#allocation3], 0
    // Predicated region
    $region2: #{tpu_custom_call.1} parent=1 // pred_check
      _
    $region3: #{tpu_custom_call.1} parent=1 // pred_check_branch
      %12 = sbr.rel (0) target = $region5
    $region4: #{tpu_custom_call.1} parent=1 // pred_region
      _
    $region5: #{tpu_custom_call.1} parent=1 // pred_fallthru
      _
    // Predicated region
    $region6: #{tpu_custom_call.1} parent=1 // pred_check
      _
    $region7: #{tpu_custom_call.1} parent=1 // pred_check_branch
      %14 = sbr.rel (0) target = $region9
    $region8: #{tpu_custom_call.1} parent=1 // pred_region
      _
    $region9: #{tpu_custom_call.1} parent=1 // pred_fallthru
      _
    // Predicated region
    $region10: #{tpu_custom_call.1} parent=1 // pred_check
      _
    $region11: #{tpu_custom_call.1} parent=1 // pred_check_branch
      %16 = sbr.rel (0) target = $region13
    $region12: #{tpu_custom_call.1} parent=1 // pred_region
      _
    $region13: #{tpu_custom_call.1} parent=1 // pred_fallthru
      _
    // Predicated region
    $region14: #{tpu_custom_call.1} parent=1 // pred_check
      _
    $region15: #{tpu_custom_call.1} parent=1 // pred_check_branch
      %18 = sbr.rel (0) target = $region17
    $region16: #{tpu_custom_call.1} parent=1 // pred_region
      _
    $region17: #{tpu_custom_call.1} parent=1 // pred_fallthru
      _
    // Predicated region
    $region18: #{tpu_custom_call.1} parent=1 // pred_check
      _
    $region19: #{tpu_custom_call.1} parent=1 // pred_check_branch
      %20 = sbr.rel (0) target = $region21
    $region20: #{tpu_custom_call.1} parent=1 // pred_region
      _
    $region21: #{tpu_custom_call.1} parent=1 // pred_fallthru
      _
    %v21 = vld [vmem:[%s0] sm:$0xff]
    %v22 = vld [vmem:[%s0 + $0x8] sm:$0xff]
    %v23 = vld [vmem:[%s0 + $0x10] sm:$0xff]
    %v24 = vld [vmem:[%s0 + $0x18] sm:$0xff]
    %v25 = vld [vmem:[%s1] sm:$0xff]
    %v26 = vld [vmem:[%s1 + $0x8] sm:$0xff]
    %v27 = vld [vmem:[%s1 + $0x10] sm:$0xff]
    %v28 = vld [vmem:[%s1 + $0x18] sm:$0xff]
    %v29 = vld [vmem:[%s1 + $0x20] sm:$0xff]
    %v30 = vld [vmem:[%s1 + $0x28] sm:$0xff]
    %v31 = vld [vmem:[%s1 + $0x30] sm:$0xff]
    %v32 = vld [vmem:[%s1 + $0x38] sm:$0xff]
    %v33 = vld [vmem:[%s1 + $0x40] sm:$0xff]
    %v34 = vld [vmem:[%s1 + $0x48] sm:$0xff]
    %v35 = vld [vmem:[%s1 + $0x50] sm:$0xff]
    %v36 = vld [vmem:[%s1 + $0x58] sm:$0xff]
    %v37 = vld [vmem:[%s1 + $0x60] sm:$0xff]
    %v38 = vld [vmem:[%s1 + $0x68] sm:$0xff]
    %v39 = vld [vmem:[%s1 + $0x70] sm:$0xff]
    %v40 = vld [vmem:[%s1 + $0x78] sm:$0xff]
    %v41 = vld [vmem:[%s1 + $0x80] sm:$0xff]
    %v42 = vld [vmem:[%s1 + $0x88] sm:$0xff]
    %v43 = vld [vmem:[%s1 + $0x90] sm:$0xff]
    %v44 = vld [vmem:[%s1 + $0x98] sm:$0xff]
    %v45 = vld [vmem:[%s1 + $0xa0] sm:$0xff]
    %v46 = vld [vmem:[%s1 + $0xa8] sm:$0xff]
    %v47 = vld [vmem:[%s1 + $0xb0] sm:$0xff]
    %v48 = vld [vmem:[%s1 + $0xb8] sm:$0xff]
    %v49 = vld [vmem:[%s1 + $0xc0] sm:$0xff]
    %v50 = vld [vmem:[%s1 + $0xc8] sm:$0xff]
    %v51 = vld [vmem:[%s1 + $0xd0] sm:$0xff]
    %v52 = vld [vmem:[%s1 + $0xd8] sm:$0xff]
    %v53 = vld [vmem:[%s1 + $0xe0] sm:$0xff]
    %v54 = vld [vmem:[%s1 + $0xe8] sm:$0xff]
    %v55 = vld [vmem:[%s1 + $0xf0] sm:$0xff]
    %v56 = vld [vmem:[%s1 + $0xf8] sm:$0xff]
    %v57 = vld [vmem:[%s1 + $0x100] sm:$0xff]
    %v58 = vld [vmem:[%s1 + $0x108] sm:$0xff]
    %v59 = vld [vmem:[%s1 + $0x110] sm:$0xff]
    %v60 = vld [vmem:[%s1 + $0x118] sm:$0xff]
    %v61 = vld [vmem:[%s1 + $0x120] sm:$0xff]
    %v62 = vld [vmem:[%s1 + $0x128] sm:$0xff]
    %v63 = vld [vmem:[%s1 + $0x130] sm:$0xff]
    %v64 = vld [vmem:[%s1 + $0x138] sm:$0xff]
    %v65 = vld [vmem:[%s1 + $0x140] sm:$0xff]
    %v66 = vld [vmem:[%s1 + $0x148] sm:$0xff]
    %v67 = vld [vmem:[%s1 + $0x150] sm:$0xff]
    %v68 = vld [vmem:[%s1 + $0x158] sm:$0xff]
    %v69 = vld [vmem:[%s1 + $0x160] sm:$0xff]
    %v70 = vld [vmem:[%s1 + $0x168] sm:$0xff]
    %v71 = vld [vmem:[%s1 + $0x170] sm:$0xff]
    %v72 = vld [vmem:[%s1 + $0x178] sm:$0xff]
    %v73 = vld [vmem:[%s1 + $0x180] sm:$0xff]
    %v74 = vld [vmem:[%s1 + $0x188] sm:$0xff]
    %v75 = vld [vmem:[%s1 + $0x190] sm:$0xff]
    %v76 = vld [vmem:[%s1 + $0x198] sm:$0xff]
    %v77 = vld [vmem:[%s1 + $0x1a0] sm:$0xff]
    %v78 = vld [vmem:[%s1 + $0x1a8] sm:$0xff]
    %v79 = vld [vmem:[%s1 + $0x1b0] sm:$0xff]
    %v80 = vld [vmem:[%s1 + $0x1b8] sm:$0xff]
    %v81 = vld [vmem:[%s1 + $0x1c0] sm:$0xff]
    %v82 = vld [vmem:[%s1 + $0x1c8] sm:$0xff]
    %v83 = vld [vmem:[%s1 + $0x1d0] sm:$0xff]
    %v84 = vld [vmem:[%s1 + $0x1d8] sm:$0xff]
    %v85 = vld [vmem:[%s1 + $0x1e0] sm:$0xff]
    %v86 = vld [vmem:[%s1 + $0x1e8] sm:$0xff]
    %v87 = vld [vmem:[%s1 + $0x1f0] sm:$0xff]
    %v88 = vld [vmem:[%s1 + $0x1f8] sm:$0xff]
    %v89 = vld [vmem:[%s1 + $0x200] sm:$0xff]
    %v90 = vld [vmem:[%s1 + $0x208] sm:$0xff]
    %v91 = vld [vmem:[%s1 + $0x210] sm:$0xff]
    %v92 = vld [vmem:[%s1 + $0x218] sm:$0xff]
    %v93 = vld [vmem:[%s1 + $0x220] sm:$0xff]
    %v94 = vld [vmem:[%s1 + $0x228] sm:$0xff]
    %v95 = vld [vmem:[%s1 + $0x230] sm:$0xff]
    %v96 = vld [vmem:[%s1 + $0x238] sm:$0xff]
    %v97 = vld [vmem:[%s1 + $0x240] sm:$0xff]
    %v98 = vld [vmem:[%s1 + $0x248] sm:$0xff]
    %v99 = vld [vmem:[%s1 + $0x250] sm:$0xff]
    %v100 = vld [vmem:[%s1 + $0x258] sm:$0xff]
    %v101 = vld [vmem:[%s1 + $0x260] sm:$0xff]
    %v102 = vld [vmem:[%s1 + $0x268] sm:$0xff]
    %v103 = vld [vmem:[%s1 + $0x270] sm:$0xff]
    %v104 = vld [vmem:[%s1 + $0x278] sm:$0xff]
    %v105 = vld [vmem:[%s1 + $0x280] sm:$0xff]
    %v106 = vld [vmem:[%s1 + $0x288] sm:$0xff]
    %v107 = vld [vmem:[%s1 + $0x290] sm:$0xff]
    %v108 = vld [vmem:[%s1 + $0x298] sm:$0xff]
    %v109 = vld [vmem:[%s1 + $0x2a0] sm:$0xff]
    %v110 = vld [vmem:[%s1 + $0x2a8] sm:$0xff]
    %v111 = vld [vmem:[%s1 + $0x2b0] sm:$0xff]
    %v112 = vld [vmem:[%s1 + $0x2b8] sm:$0xff]
    %v113 = vld [vmem:[%s1 + $0x2c0] sm:$0xff]
    %v114 = vld [vmem:[%s1 + $0x2c8] sm:$0xff]
    %v115 = vld [vmem:[%s1 + $0x2d0] sm:$0xff]
    %v116 = vld [vmem:[%s1 + $0x2d8] sm:$0xff]
    %v117 = vld [vmem:[%s1 + $0x2e0] sm:$0xff]
    %v118 = vld [vmem:[%s1 + $0x2e8] sm:$0xff]
    %v119 = vld [vmem:[%s1 + $0x2f0] sm:$0xff]
    %v120 = vld [vmem:[%s1 + $0x2f8] sm:$0xff]
    %v121 = vld [vmem:[%s1 + $0x300] sm:$0xff]
    %v122 = vld [vmem:[%s1 + $0x308] sm:$0xff]
    %v123 = vld [vmem:[%s1 + $0x310] sm:$0xff]
    %v124 = vld [vmem:[%s1 + $0x318] sm:$0xff]
    %v125 = vld [vmem:[%s1 + $0x320] sm:$0xff]
    %v126 = vld [vmem:[%s1 + $0x328] sm:$0xff]
    %v127 = vld [vmem:[%s1 + $0x330] sm:$0xff]
    %v128 = vld [vmem:[%s1 + $0x338] sm:$0xff]
    %v129 = vld [vmem:[%s1 + $0x340] sm:$0xff]
    %v130 = vld [vmem:[%s1 + $0x348] sm:$0xff]
    %v131 = vld [vmem:[%s1 + $0x350] sm:$0xff]
    %v132 = vld [vmem:[%s1 + $0x358] sm:$0xff]
    %v133 = vld [vmem:[%s1 + $0x360] sm:$0xff]
    %v134 = vld [vmem:[%s1 + $0x368] sm:$0xff]
    %v135 = vld [vmem:[%s1 + $0x370] sm:$0xff]
    %v136 = vld [vmem:[%s1 + $0x378] sm:$0xff]
    %v137 = vld [vmem:[%s1 + $0x380] sm:$0xff]
    %v138 = vld [vmem:[%s1 + $0x388] sm:$0xff]
    %v139 = vld [vmem:[%s1 + $0x390] sm:$0xff]
    %v140 = vld [vmem:[%s1 + $0x398] sm:$0xff]
    %v141 = vld [vmem:[%s1 + $0x3a0] sm:$0xff]
    %v142 = vld [vmem:[%s1 + $0x3a8] sm:$0xff]
    %v143 = vld [vmem:[%s1 + $0x3b0] sm:$0xff]
    %v144 = vld [vmem:[%s1 + $0x3b8] sm:$0xff]
    %v145 = vld [vmem:[%s1 + $0x3c0] sm:$0xff]
    %v146 = vld [vmem:[%s1 + $0x3c8] sm:$0xff]
    %v147 = vld [vmem:[%s1 + $0x3d0] sm:$0xff]
    %v148 = vld [vmem:[%s1 + $0x3d8] sm:$0xff]
    %v149 = vld [vmem:[%s1 + $0x3e0] sm:$0xff]
    %v150 = vld [vmem:[%s1 + $0x3e8] sm:$0xff]
    %v151 = vld [vmem:[%s1 + $0x3f0] sm:$0xff]
    %v152 = vld [vmem:[%s1 + $0x3f8] sm:$0xff]
    %v153 = vld [vmem:[%s1 + $0x400] sm:$0xff]
    %v154 = vld [vmem:[%s1 + $0x408] sm:$0xff]
    %v155 = vld [vmem:[%s1 + $0x410] sm:$0xff]
    %v156 = vld [vmem:[%s1 + $0x418] sm:$0xff]
    %v157 = vld [vmem:[%s1 + $0x420] sm:$0xff]
    %v158 = vld [vmem:[%s1 + $0x428] sm:$0xff]
    %v159 = vld [vmem:[%s1 + $0x430] sm:$0xff]
    %v160 = vld [vmem:[%s1 + $0x438] sm:$0xff]
    %v161 = vld [vmem:[%s1 + $0x440] sm:$0xff]
    %v162 = vld [vmem:[%s1 + $0x448] sm:$0xff]
    %v163 = vld [vmem:[%s1 + $0x450] sm:$0xff]
    %v164 = vld [vmem:[%s1 + $0x458] sm:$0xff]
    %v165 = vld [vmem:[%s1 + $0x460] sm:$0xff]
    %v166 = vld [vmem:[%s1 + $0x468] sm:$0xff]
    %v167 = vld [vmem:[%s1 + $0x470] sm:$0xff]
    %v168 = vld [vmem:[%s1 + $0x478] sm:$0xff]
    %v169 = vld [vmem:[%s1 + $0x480] sm:$0xff]
    %v170 = vld [vmem:[%s1 + $0x488] sm:$0xff]
    %v171 = vld [vmem:[%s1 + $0x490] sm:$0xff]
    %v172 = vld [vmem:[%s1 + $0x498] sm:$0xff]
    %v173 = vld [vmem:[%s1 + $0x4a0] sm:$0xff]
    %v174 = vld [vmem:[%s1 + $0x4a8] sm:$0xff]
    %v175 = vld [vmem:[%s1 + $0x4b0] sm:$0xff]
    %v176 = vld [vmem:[%s1 + $0x4b8] sm:$0xff]
    %v177 = vld [vmem:[%s1 + $0x4c0] sm:$0xff]
    %v178 = vld [vmem:[%s1 + $0x4c8] sm:$0xff]
    %v179 = vld [vmem:[%s1 + $0x4d0] sm:$0xff]
    %v180 = vld [vmem:[%s1 + $0x4d8] sm:$0xff]
    %v181 = vld [vmem:[%s1 + $0x4e0] sm:$0xff]
    %v182 = vld [vmem:[%s1 + $0x4e8] sm:$0xff]
    %v183 = vld [vmem:[%s1 + $0x4f0] sm:$0xff]
    %v184 = vld [vmem:[%s1 + $0x4f8] sm:$0xff]
    %v185 = vld [vmem:[%s1 + $0x500] sm:$0xff]
    %v186 = vld [vmem:[%s1 + $0x508] sm:$0xff]
    %v187 = vld [vmem:[%s1 + $0x510] sm:$0xff]
    %v188 = vld [vmem:[%s1 + $0x518] sm:$0xff]
    %v189 = vld [vmem:[%s1 + $0x520] sm:$0xff]
    %v190 = vld [vmem:[%s1 + $0x528] sm:$0xff]
    %v191 = vld [vmem:[%s1 + $0x530] sm:$0xff]
    %v192 = vld [vmem:[%s1 + $0x538] sm:$0xff]
    %v193 = vld [vmem:[%s1 + $0x540] sm:$0xff]
    %v194 = vld [vmem:[%s1 + $0x548] sm:$0xff]
    %v195 = vld [vmem:[%s1 + $0x550] sm:$0xff]
    %v196 = vld [vmem:[%s1 + $0x558] sm:$0xff]
    %v197 = vld [vmem:[%s1 + $0x560] sm:$0xff]
    %v198 = vld [vmem:[%s1 + $0x568] sm:$0xff]
    %v199 = vld [vmem:[%s1 + $0x570] sm:$0xff]
    %v200 = vld [vmem:[%s1 + $0x578] sm:$0xff]
    %v201 = vld [vmem:[%s1 + $0x580] sm:$0xff]
    %v202 = vld [vmem:[%s1 + $0x588] sm:$0xff]
    %v203 = vld [vmem:[%s1 + $0x590] sm:$0xff]
    %v204 = vld [vmem:[%s1 + $0x598] sm:$0xff]
    %v205 = vld [vmem:[%s1 + $0x5a0] sm:$0xff]
    %v206 = vld [vmem:[%s1 + $0x5a8] sm:$0xff]
    %v207 = vld [vmem:[%s1 + $0x5b0] sm:$0xff]
    %v208 = vld [vmem:[%s1 + $0x5b8] sm:$0xff]
    %v209 = vld [vmem:[%s1 + $0x5c0] sm:$0xff]
    %v210 = vld [vmem:[%s1 + $0x5c8] sm:$0xff]
    %v211 = vld [vmem:[%s1 + $0x5d0] sm:$0xff]
    %v212 = vld [vmem:[%s1 + $0x5d8] sm:$0xff]
    %v213 = vld [vmem:[%s1 + $0x5e0] sm:$0xff]
    %v214 = vld [vmem:[%s1 + $0x5e8] sm:$0xff]
    %v215 = vld [vmem:[%s1 + $0x5f0] sm:$0xff]
    %v216 = vld [vmem:[%s1 + $0x5f8] sm:$0xff]
    %v217 = vld [vmem:[%s1 + $0x600] sm:$0xff]
    %v218 = vld [vmem:[%s1 + $0x608] sm:$0xff]
    %v219 = vld [vmem:[%s1 + $0x610] sm:$0xff]
    %v220 = vld [vmem:[%s1 + $0x618] sm:$0xff]
    %v221 = vld [vmem:[%s1 + $0x620] sm:$0xff]
    %v222 = vld [vmem:[%s1 + $0x628] sm:$0xff]
    %v223 = vld [vmem:[%s1 + $0x630] sm:$0xff]
    %v224 = vld [vmem:[%s1 + $0x638] sm:$0xff]
    %v225 = vld [vmem:[%s1 + $0x640] sm:$0xff]
    %v226 = vld [vmem:[%s1 + $0x648] sm:$0xff]
    %v227 = vld [vmem:[%s1 + $0x650] sm:$0xff]
    %v228 = vld [vmem:[%s1 + $0x658] sm:$0xff]
    %v229 = vld [vmem:[%s1 + $0x660] sm:$0xff]
    %v230 = vld [vmem:[%s1 + $0x668] sm:$0xff]
    %v231 = vld [vmem:[%s1 + $0x670] sm:$0xff]
    %v232 = vld [vmem:[%s1 + $0x678] sm:$0xff]
    %v233 = vld [vmem:[%s1 + $0x680] sm:$0xff]
    %v234 = vld [vmem:[%s1 + $0x688] sm:$0xff]
    %v235 = vld [vmem:[%s1 + $0x690] sm:$0xff]
    %v236 = vld [vmem:[%s1 + $0x698] sm:$0xff]
    %v237 = vld [vmem:[%s1 + $0x6a0] sm:$0xff]
    %v238 = vld [vmem:[%s1 + $0x6a8] sm:$0xff]
    %v239 = vld [vmem:[%s1 + $0x6b0] sm:$0xff]
    %v240 = vld [vmem:[%s1 + $0x6b8] sm:$0xff]
    %v241 = vld [vmem:[%s1 + $0x6c0] sm:$0xff]
    %v242 = vld [vmem:[%s1 + $0x6c8] sm:$0xff]
    %v243 = vld [vmem:[%s1 + $0x6d0] sm:$0xff]
    %v244 = vld [vmem:[%s1 + $0x6d8] sm:$0xff]
    %v245 = vld [vmem:[%s1 + $0x6e0] sm:$0xff]
    %v246 = vld [vmem:[%s1 + $0x6e8] sm:$0xff]
    %v247 = vld [vmem:[%s1 + $0x6f0] sm:$0xff]
    %v248 = vld [vmem:[%s1 + $0x6f8] sm:$0xff]
    %v249 = vld [vmem:[%s1 + $0x700] sm:$0xff]
    %v250 = vld [vmem:[%s1 + $0x708] sm:$0xff]
    %v251 = vld [vmem:[%s1 + $0x710] sm:$0xff]
    %v252 = vld [vmem:[%s1 + $0x718] sm:$0xff]
    %v253 = vld [vmem:[%s1 + $0x720] sm:$0xff]
    %v254 = vld [vmem:[%s1 + $0x728] sm:$0xff]
    %v255 = vld [vmem:[%s1 + $0x730] sm:$0xff]
    %v256 = vld [vmem:[%s1 + $0x738] sm:$0xff]
    %v257 = vld [vmem:[%s1 + $0x740] sm:$0xff]
    %v258 = vld [vmem:[%s1 + $0x748] sm:$0xff]
    %v259 = vld [vmem:[%s1 + $0x750] sm:$0xff]
    %v260 = vld [vmem:[%s1 + $0x758] sm:$0xff]
    %v261 = vld [vmem:[%s1 + $0x760] sm:$0xff]
    %v262 = vld [vmem:[%s1 + $0x768] sm:$0xff]
    %v263 = vld [vmem:[%s1 + $0x770] sm:$0xff]
    %v264 = vld [vmem:[%s1 + $0x778] sm:$0xff]
    %v265 = vld [vmem:[%s1 + $0x780] sm:$0xff]
    %v266 = vld [vmem:[%s1 + $0x788] sm:$0xff]
    %v267 = vld [vmem:[%s1 + $0x790] sm:$0xff]
    %v268 = vld [vmem:[%s1 + $0x798] sm:$0xff]
    %v269 = vld [vmem:[%s1 + $0x7a0] sm:$0xff]
    %v270 = vld [vmem:[%s1 + $0x7a8] sm:$0xff]
    %v271 = vld [vmem:[%s1 + $0x7b0] sm:$0xff]
    %v272 = vld [vmem:[%s1 + $0x7b8] sm:$0xff]
    %v273 = vld [vmem:[%s1 + $0x7c0] sm:$0xff]
    %v274 = vld [vmem:[%s1 + $0x7c8] sm:$0xff]
    %v275 = vld [vmem:[%s1 + $0x7d0] sm:$0xff]
    %v276 = vld [vmem:[%s1 + $0x7d8] sm:$0xff]
    %v277 = vld [vmem:[%s1 + $0x7e0] sm:$0xff]
    %v278 = vld [vmem:[%s1 + $0x7e8] sm:$0xff]
    %v279 = vld [vmem:[%s1 + $0x7f0] sm:$0xff]
    %v280 = vld [vmem:[%s1 + $0x7f8] sm:$0xff]
    %v281 = vld [vmem:[%s1 + $0x800] sm:$0xff]
    %v282 = vld [vmem:[%s1 + $0x808] sm:$0xff]
    %v283 = vld [vmem:[%s1 + $0x810] sm:$0xff]
    %v284 = vld [vmem:[%s1 + $0x818] sm:$0xff]
    %v285 = vld [vmem:[%s1 + $0x820] sm:$0xff]
    %v286 = vld [vmem:[%s1 + $0x828] sm:$0xff]
    %v287 = vld [vmem:[%s1 + $0x830] sm:$0xff]
    %v288 = vld [vmem:[%s1 + $0x838] sm:$0xff]
    %v289 = vld [vmem:[%s1 + $0x840] sm:$0xff]
    %v290 = vld [vmem:[%s1 + $0x848] sm:$0xff]
    %v291 = vld [vmem:[%s1 + $0x850] sm:$0xff]
    %v292 = vld [vmem:[%s1 + $0x858] sm:$0xff]
    %v293 = vld [vmem:[%s1 + $0x860] sm:$0xff]
    %v294 = vld [vmem:[%s1 + $0x868] sm:$0xff]
    %v295 = vld [vmem:[%s1 + $0x870] sm:$0xff]
    %v296 = vld [vmem:[%s1 + $0x878] sm:$0xff]
    %v297 = vld [vmem:[%s1 + $0x880] sm:$0xff]
    %v298 = vld [vmem:[%s1 + $0x888] sm:$0xff]
    %v299 = vld [vmem:[%s1 + $0x890] sm:$0xff]
    %v300 = vld [vmem:[%s1 + $0x898] sm:$0xff]
    %v301 = vld [vmem:[%s1 + $0x8a0] sm:$0xff]
    %v302 = vld [vmem:[%s1 + $0x8a8] sm:$0xff]
    %v303 = vld [vmem:[%s1 + $0x8b0] sm:$0xff]
    %v304 = vld [vmem:[%s1 + $0x8b8] sm:$0xff]
    %v305 = vld [vmem:[%s1 + $0x8c0] sm:$0xff]
    %v306 = vld [vmem:[%s1 + $0x8c8] sm:$0xff]
    %v307 = vld [vmem:[%s1 + $0x8d0] sm:$0xff]
    %v308 = vld [vmem:[%s1 + $0x8d8] sm:$0xff]
    %v309 = vld [vmem:[%s1 + $0x8e0] sm:$0xff]
    %v310 = vld [vmem:[%s1 + $0x8e8] sm:$0xff]
    %v311 = vld [vmem:[%s1 + $0x8f0] sm:$0xff]
    %v312 = vld [vmem:[%s1 + $0x8f8] sm:$0xff]
    %v313 = vld [vmem:[%s1 + $0x900] sm:$0xff]
    %v314 = vld [vmem:[%s1 + $0x908] sm:$0xff]
    %v315 = vld [vmem:[%s1 + $0x910] sm:$0xff]
    %v316 = vld [vmem:[%s1 + $0x918] sm:$0xff]
    %v317 = vld [vmem:[%s1 + $0x920] sm:$0xff]
    %v318 = vld [vmem:[%s1 + $0x928] sm:$0xff]
    %v319 = vld [vmem:[%s1 + $0x930] sm:$0xff]
    %v320 = vld [vmem:[%s1 + $0x938] sm:$0xff]
    %v321 = vld [vmem:[%s1 + $0x940] sm:$0xff]
    %v322 = vld [vmem:[%s1 + $0x948] sm:$0xff]
    %v323 = vld [vmem:[%s1 + $0x950] sm:$0xff]
    %v324 = vld [vmem:[%s1 + $0x958] sm:$0xff]
    %v325 = vld [vmem:[%s1 + $0x960] sm:$0xff]
    %v326 = vld [vmem:[%s1 + $0x968] sm:$0xff]
    %v327 = vld [vmem:[%s1 + $0x970] sm:$0xff]
    %v328 = vld [vmem:[%s1 + $0x978] sm:$0xff]
    %v329 = vld [vmem:[%s1 + $0x980] sm:$0xff]
    %v330 = vld [vmem:[%s1 + $0x988] sm:$0xff]
    %v331 = vld [vmem:[%s1 + $0x990] sm:$0xff]
    %v332 = vld [vmem:[%s1 + $0x998] sm:$0xff]
    %v333 = vld [vmem:[%s1 + $0x9a0] sm:$0xff]
    %v334 = vld [vmem:[%s1 + $0x9a8] sm:$0xff]
    %v335 = vld [vmem:[%s1 + $0x9b0] sm:$0xff]
    %v336 = vld [vmem:[%s1 + $0x9b8] sm:$0xff]
    %v337 = vld [vmem:[%s1 + $0x9c0] sm:$0xff]
    %v338 = vld [vmem:[%s1 + $0x9c8] sm:$0xff]
    %v339 = vld [vmem:[%s1 + $0x9d0] sm:$0xff]
    %v340 = vld [vmem:[%s1 + $0x9d8] sm:$0xff]
    %v341 = vld [vmem:[%s1 + $0x9e0] sm:$0xff]
    %v342 = vld [vmem:[%s1 + $0x9e8] sm:$0xff]
    %v343 = vld [vmem:[%s1 + $0x9f0] sm:$0xff]
    %v344 = vld [vmem:[%s1 + $0x9f8] sm:$0xff]
    %v345 = vld [vmem:[%s1 + $0xa00] sm:$0xff]
    %v346 = vld [vmem:[%s1 + $0xa08] sm:$0xff]
    %v347 = vld [vmem:[%s1 + $0xa10] sm:$0xff]
    %v348 = vld [vmem:[%s1 + $0xa18] sm:$0xff]
    %v349 = vld [vmem:[%s1 + $0xa20] sm:$0xff]
    %v350 = vld [vmem:[%s1 + $0xa28] sm:$0xff]
    %v351 = vld [vmem:[%s1 + $0xa30] sm:$0xff]
    %v352 = vld [vmem:[%s1 + $0xa38] sm:$0xff]
    %v353 = vld [vmem:[%s1 + $0xa40] sm:$0xff]
    %v354 = vld [vmem:[%s1 + $0xa48] sm:$0xff]
    %v355 = vld [vmem:[%s1 + $0xa50] sm:$0xff]
    %v356 = vld [vmem:[%s1 + $0xa58] sm:$0xff]
    %v357 = vld [vmem:[%s1 + $0xa60] sm:$0xff]
    %v358 = vld [vmem:[%s1 + $0xa68] sm:$0xff]
    %v359 = vld [vmem:[%s1 + $0xa70] sm:$0xff]
    %v360 = vld [vmem:[%s1 + $0xa78] sm:$0xff]
    %v361 = vld [vmem:[%s1 + $0xa80] sm:$0xff]
    %v362 = vld [vmem:[%s1 + $0xa88] sm:$0xff]
    %v363 = vld [vmem:[%s1 + $0xa90] sm:$0xff]
    %v364 = vld [vmem:[%s1 + $0xa98] sm:$0xff]
    %v365 = vld [vmem:[%s1 + $0xaa0] sm:$0xff]
    %v366 = vld [vmem:[%s1 + $0xaa8] sm:$0xff]
    %v367 = vld [vmem:[%s1 + $0xab0] sm:$0xff]
    %v368 = vld [vmem:[%s1 + $0xab8] sm:$0xff]
    %v369 = vld [vmem:[%s1 + $0xac0] sm:$0xff]
    %v370 = vld [vmem:[%s1 + $0xac8] sm:$0xff]
    %v371 = vld [vmem:[%s1 + $0xad0] sm:$0xff]
    %v372 = vld [vmem:[%s1 + $0xad8] sm:$0xff]
    %v373 = vld [vmem:[%s1 + $0xae0] sm:$0xff]
    %v374 = vld [vmem:[%s1 + $0xae8] sm:$0xff]
    %v375 = vld [vmem:[%s1 + $0xaf0] sm:$0xff]
    %v376 = vld [vmem:[%s1 + $0xaf8] sm:$0xff]
    %v377 = vld [vmem:[%s1 + $0xb00] sm:$0xff]
    %v378 = vld [vmem:[%s1 + $0xb08] sm:$0xff]
    %v379 = vld [vmem:[%s1 + $0xb10] sm:$0xff]
    %v380 = vld [vmem:[%s1 + $0xb18] sm:$0xff]
    %v381 = vld [vmem:[%s1 + $0xb20] sm:$0xff]
    %v382 = vld [vmem:[%s1 + $0xb28] sm:$0xff]
    %v383 = vld [vmem:[%s1 + $0xb30] sm:$0xff]
    %v384 = vld [vmem:[%s1 + $0xb38] sm:$0xff]
    %v385 = vld [vmem:[%s1 + $0xb40] sm:$0xff]
    %v386 = vld [vmem:[%s1 + $0xb48] sm:$0xff]
    %v387 = vld [vmem:[%s1 + $0xb50] sm:$0xff]
    %v388 = vld [vmem:[%s1 + $0xb58] sm:$0xff]
    %v389 = vld [vmem:[%s1 + $0xb60] sm:$0xff]
    %v390 = vld [vmem:[%s1 + $0xb68] sm:$0xff]
    %v391 = vld [vmem:[%s1 + $0xb70] sm:$0xff]
    %v392 = vld [vmem:[%s1 + $0xb78] sm:$0xff]
    %v393 = vld [vmem:[%s1 + $0xb80] sm:$0xff]
    %v394 = vld [vmem:[%s1 + $0xb88] sm:$0xff]
    %v395 = vld [vmem:[%s1 + $0xb90] sm:$0xff]
    %v396 = vld [vmem:[%s1 + $0xb98] sm:$0xff]
    %v397 = vld [vmem:[%s1 + $0xba0] sm:$0xff]
    %v398 = vld [vmem:[%s1 + $0xba8] sm:$0xff]
    %v399 = vld [vmem:[%s1 + $0xbb0] sm:$0xff]
    %v400 = vld [vmem:[%s1 + $0xbb8] sm:$0xff]
    %v401 = vld [vmem:[%s1 + $0xbc0] sm:$0xff]
    %v402 = vld [vmem:[%s1 + $0xbc8] sm:$0xff]
    %v403 = vld [vmem:[%s1 + $0xbd0] sm:$0xff]
    %v404 = vld [vmem:[%s1 + $0xbd8] sm:$0xff]
    %v405 = vld [vmem:[%s1 + $0xbe0] sm:$0xff]
    %v406 = vld [vmem:[%s1 + $0xbe8] sm:$0xff]
    %v407 = vld [vmem:[%s1 + $0xbf0] sm:$0xff]
    %v408 = vld [vmem:[%s1 + $0xbf8] sm:$0xff]
    %v409 = vld [vmem:[%s1 + $0xc00] sm:$0xff]
    %v410 = vld [vmem:[%s1 + $0xc08] sm:$0xff]
    %v411 = vld [vmem:[%s1 + $0xc10] sm:$0xff]
    %v412 = vld [vmem:[%s1 + $0xc18] sm:$0xff]
    %v413 = vld [vmem:[%s1 + $0xc20] sm:$0xff]
    %v414 = vld [vmem:[%s1 + $0xc28] sm:$0xff]
    %v415 = vld [vmem:[%s1 + $0xc30] sm:$0xff]
    %v416 = vld [vmem:[%s1 + $0xc38] sm:$0xff]
    %v417 = vld [vmem:[%s1 + $0xc40] sm:$0xff]
    %v418 = vld [vmem:[%s1 + $0xc48] sm:$0xff]
    %v419 = vld [vmem:[%s1 + $0xc50] sm:$0xff]
    %v420 = vld [vmem:[%s1 + $0xc58] sm:$0xff]
    %v421 = vld [vmem:[%s1 + $0xc60] sm:$0xff]
    %v422 = vld [vmem:[%s1 + $0xc68] sm:$0xff]
    %v423 = vld [vmem:[%s1 + $0xc70] sm:$0xff]
    %v424 = vld [vmem:[%s1 + $0xc78] sm:$0xff]
    %v425 = vld [vmem:[%s1 + $0xc80] sm:$0xff]
    %v426 = vld [vmem:[%s1 + $0xc88] sm:$0xff]
    %v427 = vld [vmem:[%s1 + $0xc90] sm:$0xff]
    %v428 = vld [vmem:[%s1 + $0xc98] sm:$0xff]
    %v429 = vld [vmem:[%s1 + $0xca0] sm:$0xff]
    %v430 = vld [vmem:[%s1 + $0xca8] sm:$0xff]
    %v431 = vld [vmem:[%s1 + $0xcb0] sm:$0xff]
    %v432 = vld [vmem:[%s1 + $0xcb8] sm:$0xff]
    %v433 = vld [vmem:[%s1 + $0xcc0] sm:$0xff]
    %v434 = vld [vmem:[%s1 + $0xcc8] sm:$0xff]
    %v435 = vld [vmem:[%s1 + $0xcd0] sm:$0xff]
    %v436 = vld [vmem:[%s1 + $0xcd8] sm:$0xff]
    %v437 = vld [vmem:[%s1 + $0xce0] sm:$0xff]
    %v438 = vld [vmem:[%s1 + $0xce8] sm:$0xff]
    %v439 = vld [vmem:[%s1 + $0xcf0] sm:$0xff]
    %v440 = vld [vmem:[%s1 + $0xcf8] sm:$0xff]
    %v441 = vld [vmem:[%s1 + $0xd00] sm:$0xff]
    %v442 = vld [vmem:[%s1 + $0xd08] sm:$0xff]
    %v443 = vld [vmem:[%s1 + $0xd10] sm:$0xff]
    %v444 = vld [vmem:[%s1 + $0xd18] sm:$0xff]
    %v445 = vld [vmem:[%s1 + $0xd20] sm:$0xff]
    %v446 = vld [vmem:[%s1 + $0xd28] sm:$0xff]
    %v447 = vld [vmem:[%s1 + $0xd30] sm:$0xff]
    %v448 = vld [vmem:[%s1 + $0xd38] sm:$0xff]
    %v449 = vld [vmem:[%s1 + $0xd40] sm:$0xff]
    %v450 = vld [vmem:[%s1 + $0xd48] sm:$0xff]
    %v451 = vld [vmem:[%s1 + $0xd50] sm:$0xff]
    %v452 = vld [vmem:[%s1 + $0xd58] sm:$0xff]
    %v453 = vld [vmem:[%s1 + $0xd60] sm:$0xff]
    %v454 = vld [vmem:[%s1 + $0xd68] sm:$0xff]
    %v455 = vld [vmem:[%s1 + $0xd70] sm:$0xff]
    %v456 = vld [vmem:[%s1 + $0xd78] sm:$0xff]
    %v457 = vld [vmem:[%s1 + $0xd80] sm:$0xff]
    %v458 = vld [vmem:[%s1 + $0xd88] sm:$0xff]
    %v459 = vld [vmem:[%s1 + $0xd90] sm:$0xff]
    %v460 = vld [vmem:[%s1 + $0xd98] sm:$0xff]
    %v461 = vld [vmem:[%s1 + $0xda0] sm:$0xff]
    %v462 = vld [vmem:[%s1 + $0xda8] sm:$0xff]
    %v463 = vld [vmem:[%s1 + $0xdb0] sm:$0xff]
    %v464 = vld [vmem:[%s1 + $0xdb8] sm:$0xff]
    %v465 = vld [vmem:[%s1 + $0xdc0] sm:$0xff]
    %v466 = vld [vmem:[%s1 + $0xdc8] sm:$0xff]
    %v467 = vld [vmem:[%s1 + $0xdd0] sm:$0xff]
    %v468 = vld [vmem:[%s1 + $0xdd8] sm:$0xff]
    %v469 = vld [vmem:[%s1 + $0xde0] sm:$0xff]
    %v470 = vld [vmem:[%s1 + $0xde8] sm:$0xff]
    %v471 = vld [vmem:[%s1 + $0xdf0] sm:$0xff]
    %v472 = vld [vmem:[%s1 + $0xdf8] sm:$0xff]
    %v473 = vld [vmem:[%s1 + $0xe00] sm:$0xff]
    %v474 = vld [vmem:[%s1 + $0xe08] sm:$0xff]
    %v475 = vld [vmem:[%s1 + $0xe10] sm:$0xff]
    %v476 = vld [vmem:[%s1 + $0xe18] sm:$0xff]
    %v477 = vld [vmem:[%s1 + $0xe20] sm:$0xff]
    %v478 = vld [vmem:[%s1 + $0xe28] sm:$0xff]
    %v479 = vld [vmem:[%s1 + $0xe30] sm:$0xff]
    %v480 = vld [vmem:[%s1 + $0xe38] sm:$0xff]
    %v481 = vld [vmem:[%s1 + $0xe40] sm:$0xff]
    %v482 = vld [vmem:[%s1 + $0xe48] sm:$0xff]
    %v483 = vld [vmem:[%s1 + $0xe50] sm:$0xff]
    %v484 = vld [vmem:[%s1 + $0xe58] sm:$0xff]
    %v485 = vld [vmem:[%s1 + $0xe60] sm:$0xff]
    %v486 = vld [vmem:[%s1 + $0xe68] sm:$0xff]
    %v487 = vld [vmem:[%s1 + $0xe70] sm:$0xff]
    %v488 = vld [vmem:[%s1 + $0xe78] sm:$0xff]
    %v489 = vld [vmem:[%s1 + $0xe80] sm:$0xff]
    %v490 = vld [vmem:[%s1 + $0xe88] sm:$0xff]
    %v491 = vld [vmem:[%s1 + $0xe90] sm:$0xff]
    %v492 = vld [vmem:[%s1 + $0xe98] sm:$0xff]
    %v493 = vld [vmem:[%s1 + $0xea0] sm:$0xff]
    %v494 = vld [vmem:[%s1 + $0xea8] sm:$0xff]
    %v495 = vld [vmem:[%s1 + $0xeb0] sm:$0xff]
    %v496 = vld [vmem:[%s1 + $0xeb8] sm:$0xff]
    %v497 = vld [vmem:[%s1 + $0xec0] sm:$0xff]
    %v498 = vld [vmem:[%s1 + $0xec8] sm:$0xff]
    %v499 = vld [vmem:[%s1 + $0xed0] sm:$0xff]
    %v500 = vld [vmem:[%s1 + $0xed8] sm:$0xff]
    %v501 = vld [vmem:[%s1 + $0xee0] sm:$0xff]
    %v502 = vld [vmem:[%s1 + $0xee8] sm:$0xff]
    %v503 = vld [vmem:[%s1 + $0xef0] sm:$0xff]
    %v504 = vld [vmem:[%s1 + $0xef8] sm:$0xff]
    %v505 = vld [vmem:[%s1 + $0xf00] sm:$0xff]
    %v506 = vld [vmem:[%s1 + $0xf08] sm:$0xff]
    %v507 = vld [vmem:[%s1 + $0xf10] sm:$0xff]
    %v508 = vld [vmem:[%s1 + $0xf18] sm:$0xff]
    %v509 = vld [vmem:[%s1 + $0xf20] sm:$0xff]
    %v510 = vld [vmem:[%s1 + $0xf28] sm:$0xff]
    %v511 = vld [vmem:[%s1 + $0xf30] sm:$0xff]
    %v512 = vld [vmem:[%s1 + $0xf38] sm:$0xff]
    %v513 = vld [vmem:[%s1 + $0xf40] sm:$0xff]
    %v514 = vld [vmem:[%s1 + $0xf48] sm:$0xff]
    %v515 = vld [vmem:[%s1 + $0xf50] sm:$0xff]
    %v516 = vld [vmem:[%s1 + $0xf58] sm:$0xff]
    %v517 = vld [vmem:[%s1 + $0xf60] sm:$0xff]
    %v518 = vld [vmem:[%s1 + $0xf68] sm:$0xff]
    %v519 = vld [vmem:[%s1 + $0xf70] sm:$0xff]
    %v520 = vld [vmem:[%s1 + $0xf78] sm:$0xff]
    %v521 = vld [vmem:[%s1 + $0xf80] sm:$0xff]
    %v522 = vld [vmem:[%s1 + $0xf88] sm:$0xff]
    %v523 = vld [vmem:[%s1 + $0xf90] sm:$0xff]
    %v524 = vld [vmem:[%s1 + $0xf98] sm:$0xff]
    %v525 = vld [vmem:[%s1 + $0xfa0] sm:$0xff]
    %v526 = vld [vmem:[%s1 + $0xfa8] sm:$0xff]
    %v527 = vld [vmem:[%s1 + $0xfb0] sm:$0xff]
    %v528 = vld [vmem:[%s1 + $0xfb8] sm:$0xff]
    %v529 = vld [vmem:[%s1 + $0xfc0] sm:$0xff]
    %v530 = vld [vmem:[%s1 + $0xfc8] sm:$0xff]
    %v531 = vld [vmem:[%s1 + $0xfd0] sm:$0xff]
    %v532 = vld [vmem:[%s1 + $0xfd8] sm:$0xff]
    %v533 = vld [vmem:[%s1 + $0xfe0] sm:$0xff]
    %v534 = vld [vmem:[%s1 + $0xfe8] sm:$0xff]
    %v535 = vld [vmem:[%s1 + $0xff0] sm:$0xff]
    %v536 = vld [vmem:[%s1 + $0xff8] sm:$0xff]
    %v537 = vld [vmem:[%s1 + $0x1000] sm:$0xff]
    %v538 = vld [vmem:[%s1 + $0x1008] sm:$0xff]
    %v539 = vld [vmem:[%s1 + $0x1010] sm:$0xff]
    %v540 = vld [vmem:[%s1 + $0x1018] sm:$0xff]
    %v541 = vld [vmem:[%s1 + $0x1020] sm:$0xff]
    %v542 = vld [vmem:[%s1 + $0x1028] sm:$0xff]
    %v543 = vld [vmem:[%s1 + $0x1030] sm:$0xff]
    %v544 = vld [vmem:[%s1 + $0x1038] sm:$0xff]
    %v545 = vld [vmem:[%s1 + $0x1040] sm:$0xff]
    %v546 = vld [vmem:[%s1 + $0x1048] sm:$0xff]
    %v547 = vld [vmem:[%s1 + $0x1050] sm:$0xff]
    %v548 = vld [vmem:[%s1 + $0x1058] sm:$0xff]
    %v549 = vld [vmem:[%s1 + $0x1060] sm:$0xff]
    %v550 = vld [vmem:[%s1 + $0x1068] sm:$0xff]
    %v551 = vld [vmem:[%s1 + $0x1070] sm:$0xff]
    %v552 = vld [vmem:[%s1 + $0x1078] sm:$0xff]
    %v553 = vld [vmem:[%s1 + $0x1080] sm:$0xff]
    %v554 = vld [vmem:[%s1 + $0x1088] sm:$0xff]
    %v555 = vld [vmem:[%s1 + $0x1090] sm:$0xff]
    %v556 = vld [vmem:[%s1 + $0x1098] sm:$0xff]
    %v557 = vld [vmem:[%s1 + $0x10a0] sm:$0xff]
    %v558 = vld [vmem:[%s1 + $0x10a8] sm:$0xff]
    %v559 = vld [vmem:[%s1 + $0x10b0] sm:$0xff]
    %v560 = vld [vmem:[%s1 + $0x10b8] sm:$0xff]
    %v561 = vld [vmem:[%s1 + $0x10c0] sm:$0xff]
    %v562 = vld [vmem:[%s1 + $0x10c8] sm:$0xff]
    %v563 = vld [vmem:[%s1 + $0x10d0] sm:$0xff]
    %v564 = vld [vmem:[%s1 + $0x10d8] sm:$0xff]
    %v565 = vld [vmem:[%s1 + $0x10e0] sm:$0xff]
    %v566 = vld [vmem:[%s1 + $0x10e8] sm:$0xff]
    %v567 = vld [vmem:[%s1 + $0x10f0] sm:$0xff]
    %v568 = vld [vmem:[%s1 + $0x10f8] sm:$0xff]
    %v569 = vld [vmem:[%s1 + $0x1100] sm:$0xff]
    %v570 = vld [vmem:[%s1 + $0x1108] sm:$0xff]
    %v571 = vld [vmem:[%s1 + $0x1110] sm:$0xff]
    %v572 = vld [vmem:[%s1 + $0x1118] sm:$0xff]
    %v573 = vld [vmem:[%s1 + $0x1120] sm:$0xff]
    %v574 = vld [vmem:[%s1 + $0x1128] sm:$0xff]
    %v575 = vld [vmem:[%s2] sm:$0xff]
    %v576 = vld [vmem:[%s2 + $0x8] sm:$0x7]
    %v579 = vlaneseq
    %v580 = vshrl.u32 %v579, 7
    %v581 = vsub.s32 0, %v580
    %v582 = vrot.slane %v575, %v581
    %v583 = vlaneseq
    %v584 = vshrl.u32 %v583, 7
    %v585 = vsub.s32 1, %v584
    %v586 = vrot.slane %v575, %v585
    %v587 = vlaneseq
    %v588 = vshrl.u32 %v587, 7
    %v589 = vsub.s32 2, %v588
    %v590 = vrot.slane %v575, %v589
    %v591 = vlaneseq
    %v592 = vshrl.u32 %v591, 7
    %v593 = vsub.s32 3, %v592
    %v594 = vrot.slane %v575, %v593
    %v595 = vlaneseq
    %v596 = vshrl.u32 %v595, 7
    %v597 = vsub.s32 4, %v596
    %v598 = vrot.slane %v575, %v597
    %v599 = vlaneseq
    %v600 = vshrl.u32 %v599, 7
    %v601 = vsub.s32 5, %v600
    %v602 = vrot.slane %v575, %v601
    %v603 = vlaneseq
    %v604 = vshrl.u32 %v603, 7
    %v605 = vsub.s32 6, %v604
    %v606 = vrot.slane %v575, %v605
    %v607 = vlaneseq
    %v608 = vshrl.u32 %v607, 7
    %v609 = vsub.s32 7, %v608
    %v610 = vrot.slane %v575, %v609
    %v611 = vlaneseq
    %v612 = vshrl.u32 %v611, 7
    %v613 = vsub.s32 0, %v612
    %v614 = vrot.slane %v576, %v613
    %v615 = vlaneseq
    %v616 = vshrl.u32 %v615, 7
    %v617 = vsub.s32 1, %v616
    %v618 = vrot.slane %v576, %v617
    %v619 = vlaneseq
    %v620 = vshrl.u32 %v619, 7
    %v621 = vsub.s32 2, %v620
    %v622 = vrot.slane %v576, %v621
    %vm634 = vcmask 130048
    %v636 = vsel %vm634, %v24, 0
    %638 = vmatprep.subr.mxu0 %v26
    %639 = vmatpush1.msra.mxu0 %v25
    %640 = vmatprep.subr.mxu0 %v37
    %641 = vmatpush1.msra.mxu0 %v36
    %642 = vmatprep.subr.mxu0 %v48
    %643 = vmatpush1.msra.mxu0 %v47
    %644 = vmatprep.subr.mxu0 %v59
    %645 = vmatpush1.msra.mxu0 %v58
    %646 = vmatprep.subr.mxu0 %v70
    %647 = vmatpush1.msra.mxu0 %v69
    %648 = vmatprep.subr.mxu0 %v81
    %649 = vmatpush1.msra.mxu0 %v80
    %650 = vmatprep.subr.mxu0 %v92
    %651 = vmatpush1.msra.mxu0 %v91
    %652 = vmatprep.subr.mxu0 %v103
    %653 = vmatpush1.msra.mxu0 %v102
    %654 = vmatprep.subr.mxu0 %v114
    %655 = vmatpush1.msra.mxu0 %v113
    %656 = vmatprep.subr.mxu0 %v125
    %657 = vmatpush1.msra.mxu0 %v124
    %658 = vmatprep.subr.mxu0 %v136
    %659 = vmatpush1.msra.mxu0 %v135
    %660 = vmatprep.subr.mxu0 %v147
    %661 = vmatpush1.msra.mxu0 %v146
    %662 = vmatprep.subr.mxu0 %v158
    %663 = vmatpush1.msra.mxu0 %v157
    %664 = vmatprep.subr.mxu0 %v169
    %665 = vmatpush1.msra.mxu0 %v168
    %666 = vmatprep.subr.mxu0 %v180
    %667 = vmatpush1.msra.mxu0 %v179
    %668 = vmatprep.subr.mxu0 %v191
    %669 = vmatpush1.msra.mxu0 %v190
    %670 = vmatprep.subr.mxu0 %v202
    %671 = vmatpush1.msra.mxu0 %v201
    %672 = vmatprep.subr.mxu0 %v213
    %673 = vmatpush1.msra.mxu0 %v212
    %674 = vmatprep.subr.mxu0 %v224
    %675 = vmatpush1.msra.mxu0 %v223
    %676 = vmatprep.subr.mxu0 %v235
    %677 = vmatpush1.msra.mxu0 %v234
    %678 = vmatprep.subr.mxu0 %v246
    %679 = vmatpush1.msra.mxu0 %v245
    %680 = vmatprep.subr.mxu0 %v257
    %681 = vmatpush1.msra.mxu0 %v256
    %682 = vmatprep.subr.mxu0 %v268
    %683 = vmatpush1.msra.mxu0 %v267
    %684 = vmatprep.subr.mxu0 %v279
    %685 = vmatpush1.msra.mxu0 %v278
    %686 = vmatprep.subr.mxu0 %v290
    %687 = vmatpush1.msra.mxu0 %v289
    %688 = vmatprep.subr.mxu0 %v301
    %689 = vmatpush1.msra.mxu0 %v300
    %690 = vmatprep.subr.mxu0 %v312
    %691 = vmatpush1.msra.mxu0 %v311
    %692 = vmatprep.subr.mxu0 %v323
    %693 = vmatpush1.msra.mxu0 %v322
    %694 = vmatprep.subr.mxu0 %v334
    %695 = vmatpush1.msra.mxu0 %v333
    %696 = vmatprep.subr.mxu0 %v345
    %697 = vmatpush1.msra.mxu0 %v344
    %698 = vmatprep.subr.mxu0 %v356
    %699 = vmatpush1.msra.mxu0 %v355
    %700 = vmatprep.subr.mxu0 %v367
    %701 = vmatpush1.msra.mxu0 %v366
    %702 = vmatprep.mubr.f32.mxu0 %v22
    %703 = vmatmul.mubr.f32.gmra.mrb[0].mxu0 %v21
    %v704 = vpop.f32.mrb[0].mxu0
    %v705 = vadd.f32 %v582, %v704
    %v706 = vpop.f32.mrb[0].mxu0
    %v707 = vadd.f32 %v586, %v706
    %708 = vdwg.mxu0
    %709 = vmatprep.subr.mxu0 %v378
    %710 = vmatpush1.msra.mxu0 %v377
    %711 = vmatprep.subr.mxu0 %v389
    %712 = vmatpush1.msra.mxu0 %v388
    %713 = vmatprep.subr.mxu0 %v400
    %714 = vmatpush1.msra.mxu0 %v399
    %715 = vmatprep.subr.mxu0 %v411
    %716 = vmatpush1.msra.mxu0 %v410
    %717 = vmatprep.subr.mxu0 %v422
    %718 = vmatpush1.msra.mxu0 %v421
    %719 = vmatprep.subr.mxu0 %v433
    %720 = vmatpush1.msra.mxu0 %v432
    %721 = vmatprep.subr.mxu0 %v444
    %722 = vmatpush1.msra.mxu0 %v443
    %723 = vmatprep.subr.mxu0 %v455
    %724 = vmatpush1.msra.mxu0 %v454
    %725 = vmatprep.subr.mxu0 %v466
    %726 = vmatpush1.msra.mxu0 %v465
    %727 = vmatprep.subr.mxu0 %v477
    %728 = vmatpush1.msra.mxu0 %v476
    %729 = vmatprep.subr.mxu0 %v488
    %730 = vmatpush1.msra.mxu0 %v487
    %731 = vmatprep.subr.mxu0 %v499
    %732 = vmatpush1.msra.mxu0 %v498
    %733 = vmatprep.subr.mxu0 %v510
    %734 = vmatpush1.msra.mxu0 %v509
    %735 = vmatprep.subr.mxu0 %v521
    %736 = vmatpush1.msra.mxu0 %v520
    %737 = vmatprep.subr.mxu0 %v532
    %738 = vmatpush1.msra.mxu0 %v531
    %739 = vmatprep.subr.mxu0 %v543
    %740 = vmatpush1.msra.mxu0 %v542
    %741 = vmatprep.subr.mxu0 %v554
    %742 = vmatpush1.msra.mxu0 %v553
    %743 = vmatprep.subr.mxu0 %v565
    %744 = vmatpush1.msra.mxu0 %v564
    %745 = vmatprep.subr.mxu0 0.0
    %746 = vmatpush1.msra.mxu0 0.0
    %747 = vmatprep.subr.mxu0 0.0
    %748 = vmatpush1.msra.mxu0 0.0
    %749 = vmatprep.subr.mxu0 0.0
    %750 = vmatpush1.msra.mxu0 0.0
    %751 = vmatprep.subr.mxu0 0.0
    %752 = vmatpush1.msra.mxu0 0.0
    %753 = vmatprep.subr.mxu0 0.0
    %754 = vmatpush1.msra.mxu0 0.0
    %755 = vmatprep.subr.mxu0 0.0
    %756 = vmatpush1.msra.mxu0 0.0
    %757 = vmatprep.subr.mxu0 0.0
    %758 = vmatpush1.msra.mxu0 0.0
    %759 = vmatprep.subr.mxu0 0.0
    %760 = vmatpush1.msra.mxu0 0.0
    %761 = vmatprep.subr.mxu0 0.0
    %762 = vmatpush1.msra.mxu0 0.0
    %763 = vmatprep.subr.mxu0 0.0
    %764 = vmatpush1.msra.mxu0 0.0
    %765 = vmatprep.subr.mxu0 0.0
    %766 = vmatpush1.msra.mxu0 0.0
    %767 = vmatprep.subr.mxu0 0.0
    %768 = vmatpush1.msra.mxu0 0.0
    %769 = vmatprep.subr.mxu0 0.0
    %770 = vmatpush1.msra.mxu0 0.0
    %771 = vmatprep.subr.mxu0 0.0
    %772 = vmatpush1.msra.mxu0 0.0
    %773 = vmatprep.mubr.f32.mxu0 %v636
    %774 = vmatmul.mubr.f32.gmra.mrb[0].mxu0 %v23
    %v775 = vpop.f32.mrb[0].mxu0
    %v776 = vadd.f32 %v705, %v775
    %v777 = vpop.f32.mrb[0].mxu0
    %v778 = vadd.f32 %v707, %v777
    %779 = vdwg.mxu0
    %780 = vmatprep.subr.mxu0 %v28
    %781 = vmatpush1.msra.mxu0 %v27
    %782 = vmatprep.subr.mxu0 %v39
    %783 = vmatpush1.msra.mxu0 %v38
    %784 = vmatprep.subr.mxu0 %v50
    %785 = vmatpush1.msra.mxu0 %v49
    %786 = vmatprep.subr.mxu0 %v61
    %787 = vmatpush1.msra.mxu0 %v60
    %788 = vmatprep.subr.mxu0 %v72
    %789 = vmatpush1.msra.mxu0 %v71
    %790 = vmatprep.subr.mxu0 %v83
    %791 = vmatpush1.msra.mxu0 %v82
    %792 = vmatprep.subr.mxu0 %v94
    %793 = vmatpush1.msra.mxu0 %v93
    %794 = vmatprep.subr.mxu0 %v105
    %795 = vmatpush1.msra.mxu0 %v104
    %796 = vmatprep.subr.mxu0 %v116
    %797 = vmatpush1.msra.mxu0 %v115
    %798 = vmatprep.subr.mxu0 %v127
    %799 = vmatpush1.msra.mxu0 %v126
    %800 = vmatprep.subr.mxu0 %v138
    %801 = vmatpush1.msra.mxu0 %v137
    %802 = vmatprep.subr.mxu0 %v149
    %803 = vmatpush1.msra.mxu0 %v148
    %804 = vmatprep.subr.mxu0 %v160
    %805 = vmatpush1.msra.mxu0 %v159
    %806 = vmatprep.subr.mxu0 %v171
    %807 = vmatpush1.msra.mxu0 %v170
    %808 = vmatprep.subr.mxu0 %v182
    %809 = vmatpush1.msra.mxu0 %v181
    %810 = vmatprep.subr.mxu0 %v193
    %811 = vmatpush1.msra.mxu0 %v192
    %812 = vmatprep.subr.mxu0 %v204
    %813 = vmatpush1.msra.mxu0 %v203
    %814 = vmatprep.subr.mxu0 %v215
    %815 = vmatpush1.msra.mxu0 %v214
    %816 = vmatprep.subr.mxu0 %v226
    %817 = vmatpush1.msra.mxu0 %v225
    %818 = vmatprep.subr.mxu0 %v237
    %819 = vmatpush1.msra.mxu0 %v236
    %820 = vmatprep.subr.mxu0 %v248
    %821 = vmatpush1.msra.mxu0 %v247
    %822 = vmatprep.subr.mxu0 %v259
    %823 = vmatpush1.msra.mxu0 %v258
    %824 = vmatprep.subr.mxu0 %v270
    %825 = vmatpush1.msra.mxu0 %v269
    %826 = vmatprep.subr.mxu0 %v281
    %827 = vmatpush1.msra.mxu0 %v280
    %828 = vmatprep.subr.mxu0 %v292
    %829 = vmatpush1.msra.mxu0 %v291
    %830 = vmatprep.subr.mxu0 %v303
    %831 = vmatpush1.msra.mxu0 %v302
    %832 = vmatprep.subr.mxu0 %v314
    %833 = vmatpush1.msra.mxu0 %v313
    %834 = vmatprep.subr.mxu0 %v325
    %835 = vmatpush1.msra.mxu0 %v324
    %836 = vmatprep.subr.mxu0 %v336
    %837 = vmatpush1.msra.mxu0 %v335
    %838 = vmatprep.subr.mxu0 %v347
    %839 = vmatpush1.msra.mxu0 %v346
    %840 = vmatprep.subr.mxu0 %v358
    %841 = vmatpush1.msra.mxu0 %v357
    %842 = vmatprep.subr.mxu0 %v369
    %843 = vmatpush1.msra.mxu0 %v368
    %844 = vmatprep.mubr.f32.mxu0 %v22
    %845 = vmatmul.mubr.f32.gmra.mrb[0].mxu0 %v21
    %v846 = vpop.f32.mrb[0].mxu0
    %v847 = vadd.f32 %v590, %v846
    %v848 = vpop.f32.mrb[0].mxu0
    %v849 = vadd.f32 %v594, %v848
    %850 = vdwg.mxu0
    %851 = vmatprep.subr.mxu0 %v380
    %852 = vmatpush1.msra.mxu0 %v379
    %853 = vmatprep.subr.mxu0 %v391
    %854 = vmatpush1.msra.mxu0 %v390
    %855 = vmatprep.subr.mxu0 %v402
    %856 = vmatpush1.msra.mxu0 %v401
    %857 = vmatprep.subr.mxu0 %v413
    %858 = vmatpush1.msra.mxu0 %v412
    %859 = vmatprep.subr.mxu0 %v424
    %860 = vmatpush1.msra.mxu0 %v423
    %861 = vmatprep.subr.mxu0 %v435
    %862 = vmatpush1.msra.mxu0 %v434
    %863 = vmatprep.subr.mxu0 %v446
    %864 = vmatpush1.msra.mxu0 %v445
    %865 = vmatprep.subr.mxu0 %v457
    %866 = vmatpush1.msra.mxu0 %v456
    %867 = vmatprep.subr.mxu0 %v468
    %868 = vmatpush1.msra.mxu0 %v467
    %869 = vmatprep.subr.mxu0 %v479
    %870 = vmatpush1.msra.mxu0 %v478
    %871 = vmatprep.subr.mxu0 %v490
    %872 = vmatpush1.msra.mxu0 %v489
    %873 = vmatprep.subr.mxu0 %v501
    %874 = vmatpush1.msra.mxu0 %v500
    %875 = vmatprep.subr.mxu0 %v512
    %876 = vmatpush1.msra.mxu0 %v511
    %877 = vmatprep.subr.mxu0 %v523
    %878 = vmatpush1.msra.mxu0 %v522
    %879 = vmatprep.subr.mxu0 %v534
    %880 = vmatpush1.msra.mxu0 %v533
    %881 = vmatprep.subr.mxu0 %v545
    %882 = vmatpush1.msra.mxu0 %v544
    %883 = vmatprep.subr.mxu0 %v556
    %884 = vmatpush1.msra.mxu0 %v555
    %885 = vmatprep.subr.mxu0 %v567
    %886 = vmatpush1.msra.mxu0 %v566
    %887 = vmatprep.subr.mxu0 0.0
    %888 = vmatpush1.msra.mxu0 0.0
    %889 = vmatprep.subr.mxu0 0.0
    %890 = vmatpush1.msra.mxu0 0.0
    %891 = vmatprep.subr.mxu0 0.0
    %892 = vmatpush1.msra.mxu0 0.0
    %893 = vmatprep.subr.mxu0 0.0
    %894 = vmatpush1.msra.mxu0 0.0
    %895 = vmatprep.subr.mxu0 0.0
    %896 = vmatpush1.msra.mxu0 0.0
    %897 = vmatprep.subr.mxu0 0.0
    %898 = vmatpush1.msra.mxu0 0.0
    %899 = vmatprep.subr.mxu0 0.0
    %900 = vmatpush1.msra.mxu0 0.0
    %901 = vmatprep.subr.mxu0 0.0
    %902 = vmatpush1.msra.mxu0 0.0
    %903 = vmatprep.subr.mxu0 0.0
    %904 = vmatpush1.msra.mxu0 0.0
    %905 = vmatprep.subr.mxu0 0.0
    %906 = vmatpush1.msra.mxu0 0.0
    %907 = vmatprep.subr.mxu0 0.0
    %908 = vmatpush1.msra.mxu0 0.0
    %909 = vmatprep.subr.mxu0 0.0
    %910 = vmatpush1.msra.mxu0 0.0
    %911 = vmatprep.subr.mxu0 0.0
    %912 = vmatpush1.msra.mxu0 0.0
    %913 = vmatprep.subr.mxu0 0.0
    %914 = vmatpush1.msra.mxu0 0.0
    %915 = vmatprep.mubr.f32.mxu0 %v636
    %916 = vmatmul.mubr.f32.gmra.mrb[0].mxu0 %v23
    %v917 = vpop.f32.mrb[0].mxu0
    %v918 = vadd.f32 %v847, %v917
    %v919 = vpop.f32.mrb[0].mxu0
    %v920 = vadd.f32 %v849, %v919
    %921 = vdwg.mxu0
    %922 = vmatprep.subr.mxu0 %v30
    %923 = vmatpush1.msra.mxu0 %v29
    %924 = vmatprep.subr.mxu0 %v41
    %925 = vmatpush1.msra.mxu0 %v40
    %926 = vmatprep.subr.mxu0 %v52
    %927 = vmatpush1.msra.mxu0 %v51
    %928 = vmatprep.subr.mxu0 %v63
    %929 = vmatpush1.msra.mxu0 %v62
    %930 = vmatprep.subr.mxu0 %v74
    %931 = vmatpush1.msra.mxu0 %v73
    %932 = vmatprep.subr.mxu0 %v85
    %933 = vmatpush1.msra.mxu0 %v84
    %934 = vmatprep.subr.mxu0 %v96
    %935 = vmatpush1.msra.mxu0 %v95
    %936 = vmatprep.subr.mxu0 %v107
    %937 = vmatpush1.msra.mxu0 %v106
    %938 = vmatprep.subr.mxu0 %v118
    %939 = vmatpush1.msra.mxu0 %v117
    %940 = vmatprep.subr.mxu0 %v129
    %941 = vmatpush1.msra.mxu0 %v128
    %942 = vmatprep.subr.mxu0 %v140
    %943 = vmatpush1.msra.mxu0 %v139
    %944 = vmatprep.subr.mxu0 %v151
    %945 = vmatpush1.msra.mxu0 %v150
    %946 = vmatprep.subr.mxu0 %v162
    %947 = vmatpush1.msra.mxu0 %v161
    %948 = vmatprep.subr.mxu0 %v173
    %949 = vmatpush1.msra.mxu0 %v172
    %950 = vmatprep.subr.mxu0 %v184
    %951 = vmatpush1.msra.mxu0 %v183
    %952 = vmatprep.subr.mxu0 %v195
    %953 = vmatpush1.msra.mxu0 %v194
    %954 = vmatprep.subr.mxu0 %v206
    %955 = vmatpush1.msra.mxu0 %v205
    %956 = vmatprep.subr.mxu0 %v217
    %957 = vmatpush1.msra.mxu0 %v216
    %958 = vmatprep.subr.mxu0 %v228
    %959 = vmatpush1.msra.mxu0 %v227
    %960 = vmatprep.subr.mxu0 %v239
    %961 = vmatpush1.msra.mxu0 %v238
    %962 = vmatprep.subr.mxu0 %v250
    %963 = vmatpush1.msra.mxu0 %v249
    %964 = vmatprep.subr.mxu0 %v261
    %965 = vmatpush1.msra.mxu0 %v260
    %966 = vmatprep.subr.mxu0 %v272
    %967 = vmatpush1.msra.mxu0 %v271
    %968 = vmatprep.subr.mxu0 %v283
    %969 = vmatpush1.msra.mxu0 %v282
    %970 = vmatprep.subr.mxu0 %v294
    %971 = vmatpush1.msra.mxu0 %v293
    %972 = vmatprep.subr.mxu0 %v305
    %973 = vmatpush1.msra.mxu0 %v304
    %974 = vmatprep.subr.mxu0 %v316
    %975 = vmatpush1.msra.mxu0 %v315
    %976 = vmatprep.subr.mxu0 %v327
    %977 = vmatpush1.msra.mxu0 %v326
    %978 = vmatprep.subr.mxu0 %v338
    %979 = vmatpush1.msra.mxu0 %v337
    %980 = vmatprep.subr.mxu0 %v349
    %981 = vmatpush1.msra.mxu0 %v348
    %982 = vmatprep.subr.mxu0 %v360
    %983 = vmatpush1.msra.mxu0 %v359
    %984 = vmatprep.subr.mxu0 %v371
    %985 = vmatpush1.msra.mxu0 %v370
    %986 = vmatprep.mubr.f32.mxu0 %v22
    %987 = vmatmul.mubr.f32.gmra.mrb[0].mxu0 %v21
    %v988 = vpop.f32.mrb[0].mxu0
    %v989 = vadd.f32 %v598, %v988
    %v990 = vpop.f32.mrb[0].mxu0
    %v991 = vadd.f32 %v602, %v990
    %992 = vdwg.mxu0
    %993 = vmatprep.subr.mxu0 %v382
    %994 = vmatpush1.msra.mxu0 %v381
    %995 = vmatprep.subr.mxu0 %v393
    %996 = vmatpush1.msra.mxu0 %v392
    %997 = vmatprep.subr.mxu0 %v404
    %998 = vmatpush1.msra.mxu0 %v403
    %999 = vmatprep.subr.mxu0 %v415
    %1000 = vmatpush1.msra.mxu0 %v414
    %1001 = vmatprep.subr.mxu0 %v426
    %1002 = vmatpush1.msra.mxu0 %v425
    %1003 = vmatprep.subr.mxu0 %v437
    %1004 = vmatpush1.msra.mxu0 %v436
    %1005 = vmatprep.subr.mxu0 %v448
    %1006 = vmatpush1.msra.mxu0 %v447
    %1007 = vmatprep.subr.mxu0 %v459
    %1008 = vmatpush1.msra.mxu0 %v458
    %1009 = vmatprep.subr.mxu0 %v470
    %1010 = vmatpush1.msra.mxu0 %v469
    %1011 = vmatprep.subr.mxu0 %v481
    %1012 = vmatpush1.msra.mxu0 %v480
    %1013 = vmatprep.subr.mxu0 %v492
    %1014 = vmatpush1.msra.mxu0 %v491
    %1015 = vmatprep.subr.mxu0 %v503
    %1016 = vmatpush1.msra.mxu0 %v502
    %1017 = vmatprep.subr.mxu0 %v514
    %1018 = vmatpush1.msra.mxu0 %v513
    %1019 = vmatprep.subr.mxu0 %v525
    %1020 = vmatpush1.msra.mxu0 %v524
    %1021 = vmatprep.subr.mxu0 %v536
    %1022 = vmatpush1.msra.mxu0 %v535
    %1023 = vmatprep.subr.mxu0 %v547
    %1024 = vmatpush1.msra.mxu0 %v546
    %1025 = vmatprep.subr.mxu0 %v558
    %1026 = vmatpush1.msra.mxu0 %v557
    %1027 = vmatprep.subr.mxu0 %v569
    %1028 = vmatpush1.msra.mxu0 %v568
    %1029 = vmatprep.subr.mxu0 0.0
    %1030 = vmatpush1.msra.mxu0 0.0
    %1031 = vmatprep.subr.mxu0 0.0
    %1032 = vmatpush1.msra.mxu0 0.0
    %1033 = vmatprep.subr.mxu0 0.0
    %1034 = vmatpush1.msra.mxu0 0.0
    %1035 = vmatprep.subr.mxu0 0.0
    %1036 = vmatpush1.msra.mxu0 0.0
    %1037 = vmatprep.subr.mxu0 0.0
    %1038 = vmatpush1.msra.mxu0 0.0
    %1039 = vmatprep.subr.mxu0 0.0
    %1040 = vmatpush1.msra.mxu0 0.0
    %1041 = vmatprep.subr.mxu0 0.0
    %1042 = vmatpush1.msra.mxu0 0.0
    %1043 = vmatprep.subr.mxu0 0.0
    %1044 = vmatpush1.msra.mxu0 0.0
    %1045 = vmatprep.subr.mxu0 0.0
    %1046 = vmatpush1.msra.mxu0 0.0
    %1047 = vmatprep.subr.mxu0 0.0
    %1048 = vmatpush1.msra.mxu0 0.0
    %1049 = vmatprep.subr.mxu0 0.0
    %1050 = vmatpush1.msra.mxu0 0.0
    %1051 = vmatprep.subr.mxu0 0.0
    %1052 = vmatpush1.msra.mxu0 0.0
    %1053 = vmatprep.subr.mxu0 0.0
    %1054 = vmatpush1.msra.mxu0 0.0
    %1055 = vmatprep.subr.mxu0 0.0
    %1056 = vmatpush1.msra.mxu0 0.0
    %1057 = vmatprep.mubr.f32.mxu0 %v636
    %1058 = vmatmul.mubr.f32.gmra.mrb[0].mxu0 %v23
    %v1059 = vpop.f32.mrb[0].mxu0
    %v1060 = vadd.f32 %v989, %v1059
    %v1061 = vpop.f32.mrb[0].mxu0
    %v1062 = vadd.f32 %v991, %v1061
    %1063 = vdwg.mxu0
    %1064 = vmatprep.subr.mxu0 %v32
    %1065 = vmatpush1.msra.mxu0 %v31
    %1066 = vmatprep.subr.mxu0 %v43
    %1067 = vmatpush1.msra.mxu0 %v42
    %1068 = vmatprep.subr.mxu0 %v54
    %1069 = vmatpush1.msra.mxu0 %v53
    %1070 = vmatprep.subr.mxu0 %v65
    %1071 = vmatpush1.msra.mxu0 %v64
    %1072 = vmatprep.subr.mxu0 %v76
    %1073 = vmatpush1.msra.mxu0 %v75
    %1074 = vmatprep.subr.mxu0 %v87
    %1075 = vmatpush1.msra.mxu0 %v86
    %1076 = vmatprep.subr.mxu0 %v98
    %1077 = vmatpush1.msra.mxu0 %v97
    %1078 = vmatprep.subr.mxu0 %v109
    %1079 = vmatpush1.msra.mxu0 %v108
    %1080 = vmatprep.subr.mxu0 %v120
    %1081 = vmatpush1.msra.mxu0 %v119
    %1082 = vmatprep.subr.mxu0 %v131
    %1083 = vmatpush1.msra.mxu0 %v130
    %1084 = vmatprep.subr.mxu0 %v142
    %1085 = vmatpush1.msra.mxu0 %v141
    %1086 = vmatprep.subr.mxu0 %v153
    %1087 = vmatpush1.msra.mxu0 %v152
    %1088 = vmatprep.subr.mxu0 %v164
    %1089 = vmatpush1.msra.mxu0 %v163
    %1090 = vmatprep.subr.mxu0 %v175
    %1091 = vmatpush1.msra.mxu0 %v174
    %1092 = vmatprep.subr.mxu0 %v186
    %1093 = vmatpush1.msra.mxu0 %v185
    %1094 = vmatprep.subr.mxu0 %v197
    %1095 = vmatpush1.msra.mxu0 %v196
    %1096 = vmatprep.subr.mxu0 %v208
    %1097 = vmatpush1.msra.mxu0 %v207
    %1098 = vmatprep.subr.mxu0 %v219
    %1099 = vmatpush1.msra.mxu0 %v218
    %1100 = vmatprep.subr.mxu0 %v230
    %1101 = vmatpush1.msra.mxu0 %v229
    %1102 = vmatprep.subr.mxu0 %v241
    %1103 = vmatpush1.msra.mxu0 %v240
    %1104 = vmatprep.subr.mxu0 %v252
    %1105 = vmatpush1.msra.mxu0 %v251
    %1106 = vmatprep.subr.mxu0 %v263
    %1107 = vmatpush1.msra.mxu0 %v262
    %1108 = vmatprep.subr.mxu0 %v274
    %1109 = vmatpush1.msra.mxu0 %v273
    %1110 = vmatprep.subr.mxu0 %v285
    %1111 = vmatpush1.msra.mxu0 %v284
    %1112 = vmatprep.subr.mxu0 %v296
    %1113 = vmatpush1.msra.mxu0 %v295
    %1114 = vmatprep.subr.mxu0 %v307
    %1115 = vmatpush1.msra.mxu0 %v306
    %1116 = vmatprep.subr.mxu0 %v318
    %1117 = vmatpush1.msra.mxu0 %v317
    %1118 = vmatprep.subr.mxu0 %v329
    %1119 = vmatpush1.msra.mxu0 %v328
    %1120 = vmatprep.subr.mxu0 %v340
    %1121 = vmatpush1.msra.mxu0 %v339
    %1122 = vmatprep.subr.mxu0 %v351
    %1123 = vmatpush1.msra.mxu0 %v350
    %1124 = vmatprep.subr.mxu0 %v362
    %1125 = vmatpush1.msra.mxu0 %v361
    %1126 = vmatprep.subr.mxu0 %v373
    %1127 = vmatpush1.msra.mxu0 %v372
    %1128 = vmatprep.mubr.f32.mxu0 %v22
    %1129 = vmatmul.mubr.f32.gmra.mrb[0].mxu0 %v21
    %v1130 = vpop.f32.mrb[0].mxu0
    %v1131 = vadd.f32 %v606, %v1130
    %v1132 = vpop.f32.mrb[0].mxu0
    %v1133 = vadd.f32 %v610, %v1132
    %1134 = vdwg.mxu0
    %1135 = vmatprep.subr.mxu0 %v384
    %1136 = vmatpush1.msra.mxu0 %v383
    %1137 = vmatprep.subr.mxu0 %v395
    %1138 = vmatpush1.msra.mxu0 %v394
    %1139 = vmatprep.subr.mxu0 %v406
    %1140 = vmatpush1.msra.mxu0 %v405
    %1141 = vmatprep.subr.mxu0 %v417
    %1142 = vmatpush1.msra.mxu0 %v416
    %1143 = vmatprep.subr.mxu0 %v428
    %1144 = vmatpush1.msra.mxu0 %v427
    %1145 = vmatprep.subr.mxu0 %v439
    %1146 = vmatpush1.msra.mxu0 %v438
    %1147 = vmatprep.subr.mxu0 %v450
    %1148 = vmatpush1.msra.mxu0 %v449
    %1149 = vmatprep.subr.mxu0 %v461
    %1150 = vmatpush1.msra.mxu0 %v460
    %1151 = vmatprep.subr.mxu0 %v472
    %1152 = vmatpush1.msra.mxu0 %v471
    %1153 = vmatprep.subr.mxu0 %v483
    %1154 = vmatpush1.msra.mxu0 %v482
    %1155 = vmatprep.subr.mxu0 %v494
    %1156 = vmatpush1.msra.mxu0 %v493
    %1157 = vmatprep.subr.mxu0 %v505
    %1158 = vmatpush1.msra.mxu0 %v504
    %1159 = vmatprep.subr.mxu0 %v516
    %1160 = vmatpush1.msra.mxu0 %v515
    %1161 = vmatprep.subr.mxu0 %v527
    %1162 = vmatpush1.msra.mxu0 %v526
    %1163 = vmatprep.subr.mxu0 %v538
    %1164 = vmatpush1.msra.mxu0 %v537
    %1165 = vmatprep.subr.mxu0 %v549
    %1166 = vmatpush1.msra.mxu0 %v548
    %1167 = vmatprep.subr.mxu0 %v560
    %1168 = vmatpush1.msra.mxu0 %v559
    %1169 = vmatprep.subr.mxu0 %v571
    %1170 = vmatpush1.msra.mxu0 %v570
    %1171 = vmatprep.subr.mxu0 0.0
    %1172 = vmatpush1.msra.mxu0 0.0
    %1173 = vmatprep.subr.mxu0 0.0
    %1174 = vmatpush1.msra.mxu0 0.0
    %1175 = vmatprep.subr.mxu0 0.0
    %1176 = vmatpush1.msra.mxu0 0.0
    %1177 = vmatprep.subr.mxu0 0.0
    %1178 = vmatpush1.msra.mxu0 0.0
    %1179 = vmatprep.subr.mxu0 0.0
    %1180 = vmatpush1.msra.mxu0 0.0
    %1181 = vmatprep.subr.mxu0 0.0
    %1182 = vmatpush1.msra.mxu0 0.0
    %1183 = vmatprep.subr.mxu0 0.0
    %1184 = vmatpush1.msra.mxu0 0.0
    %1185 = vmatprep.subr.mxu0 0.0
    %1186 = vmatpush1.msra.mxu0 0.0
    %1187 = vmatprep.subr.mxu0 0.0
    %1188 = vmatpush1.msra.mxu0 0.0
    %1189 = vmatprep.subr.mxu0 0.0
    %1190 = vmatpush1.msra.mxu0 0.0
    %1191 = vmatprep.subr.mxu0 0.0
    %1192 = vmatpush1.msra.mxu0 0.0
    %1193 = vmatprep.subr.mxu0 0.0
    %1194 = vmatpush1.msra.mxu0 0.0
    %1195 = vmatprep.subr.mxu0 0.0
    %1196 = vmatpush1.msra.mxu0 0.0
    %1197 = vmatprep.subr.mxu0 0.0
    %1198 = vmatpush1.msra.mxu0 0.0
    %1199 = vmatprep.mubr.f32.mxu0 %v636
    %1200 = vmatmul.mubr.f32.gmra.mrb[0].mxu0 %v23
    %v1201 = vpop.f32.mrb[0].mxu0
    %v1202 = vadd.f32 %v1131, %v1201
    %v1203 = vpop.f32.mrb[0].mxu0
    %v1204 = vadd.f32 %v1133, %v1203
    %1205 = vdwg.mxu0
    %1206 = vmatprep.subr.mxu0 %v34
    %1207 = vmatpush1.msra.mxu0 %v33
    %1208 = vmatprep.subr.mxu0 %v45
    %1209 = vmatpush1.msra.mxu0 %v44
    %1210 = vmatprep.subr.mxu0 %v56
    %1211 = vmatpush1.msra.mxu0 %v55
    %1212 = vmatprep.subr.mxu0 %v67
    %1213 = vmatpush1.msra.mxu0 %v66
    %1214 = vmatprep.subr.mxu0 %v78
    %1215 = vmatpush1.msra.mxu0 %v77
    %1216 = vmatprep.subr.mxu0 %v89
    %1217 = vmatpush1.msra.mxu0 %v88
    %1218 = vmatprep.subr.mxu0 %v100
    %1219 = vmatpush1.msra.mxu0 %v99
    %1220 = vmatprep.subr.mxu0 %v111
    %1221 = vmatpush1.msra.mxu0 %v110
    %1222 = vmatprep.subr.mxu0 %v122
    %1223 = vmatpush1.msra.mxu0 %v121
    %1224 = vmatprep.subr.mxu0 %v133
    %1225 = vmatpush1.msra.mxu0 %v132
    %1226 = vmatprep.subr.mxu0 %v144
    %1227 = vmatpush1.msra.mxu0 %v143
    %1228 = vmatprep.subr.mxu0 %v155
    %1229 = vmatpush1.msra.mxu0 %v154
    %1230 = vmatprep.subr.mxu0 %v166
    %1231 = vmatpush1.msra.mxu0 %v165
    %1232 = vmatprep.subr.mxu0 %v177
    %1233 = vmatpush1.msra.mxu0 %v176
    %1234 = vmatprep.subr.mxu0 %v188
    %1235 = vmatpush1.msra.mxu0 %v187
    %1236 = vmatprep.subr.mxu0 %v199
    %1237 = vmatpush1.msra.mxu0 %v198
    %1238 = vmatprep.subr.mxu0 %v210
    %1239 = vmatpush1.msra.mxu0 %v209
    %1240 = vmatprep.subr.mxu0 %v221
    %1241 = vmatpush1.msra.mxu0 %v220
    %1242 = vmatprep.subr.mxu0 %v232
    %1243 = vmatpush1.msra.mxu0 %v231
    %1244 = vmatprep.subr.mxu0 %v243
    %1245 = vmatpush1.msra.mxu0 %v242
    %1246 = vmatprep.subr.mxu0 %v254
    %1247 = vmatpush1.msra.mxu0 %v253
    %1248 = vmatprep.subr.mxu0 %v265
    %1249 = vmatpush1.msra.mxu0 %v264
    %1250 = vmatprep.subr.mxu0 %v276
    %1251 = vmatpush1.msra.mxu0 %v275
    %1252 = vmatprep.subr.mxu0 %v287
    %1253 = vmatpush1.msra.mxu0 %v286
    %1254 = vmatprep.subr.mxu0 %v298
    %1255 = vmatpush1.msra.mxu0 %v297
    %1256 = vmatprep.subr.mxu0 %v309
    %1257 = vmatpush1.msra.mxu0 %v308
    %1258 = vmatprep.subr.mxu0 %v320
    %1259 = vmatpush1.msra.mxu0 %v319
    %1260 = vmatprep.subr.mxu0 %v331
    %1261 = vmatpush1.msra.mxu0 %v330
    %1262 = vmatprep.subr.mxu0 %v342
    %1263 = vmatpush1.msra.mxu0 %v341
    %1264 = vmatprep.subr.mxu0 %v353
    %1265 = vmatpush1.msra.mxu0 %v352
    %1266 = vmatprep.subr.mxu0 %v364
    %1267 = vmatpush1.msra.mxu0 %v363
    %1268 = vmatprep.subr.mxu0 %v375
    %1269 = vmatpush1.msra.mxu0 %v374
    %1270 = vmatprep.mubr.f32.mxu0 %v22
    %1271 = vmatmul.mubr.f32.gmra.mrb[0].mxu0 %v21
    %v1272 = vpop.f32.mrb[0].mxu0
    %v1273 = vadd.f32 %v614, %v1272
    %v1274 = vpop.f32.mrb[0].mxu0
    %v1275 = vadd.f32 %v618, %v1274
    %1276 = vdwg.mxu0
    %1277 = vmatprep.subr.mxu0 %v386
    %1278 = vmatpush1.msra.mxu0 %v385
    %1279 = vmatprep.subr.mxu0 %v397
    %1280 = vmatpush1.msra.mxu0 %v396
    %1281 = vmatprep.subr.mxu0 %v408
    %1282 = vmatpush1.msra.mxu0 %v407
    %1283 = vmatprep.subr.mxu0 %v419
    %1284 = vmatpush1.msra.mxu0 %v418
    %1285 = vmatprep.subr.mxu0 %v430
    %1286 = vmatpush1.msra.mxu0 %v429
    %1287 = vmatprep.subr.mxu0 %v441
    %1288 = vmatpush1.msra.mxu0 %v440
    %1289 = vmatprep.subr.mxu0 %v452
    %1290 = vmatpush1.msra.mxu0 %v451
    %1291 = vmatprep.subr.mxu0 %v463
    %1292 = vmatpush1.msra.mxu0 %v462
    %1293 = vmatprep.subr.mxu0 %v474
    %1294 = vmatpush1.msra.mxu0 %v473
    %1295 = vmatprep.subr.mxu0 %v485
    %1296 = vmatpush1.msra.mxu0 %v484
    %1297 = vmatprep.subr.mxu0 %v496
    %1298 = vmatpush1.msra.mxu0 %v495
    %1299 = vmatprep.subr.mxu0 %v507
    %1300 = vmatpush1.msra.mxu0 %v506
    %1301 = vmatprep.subr.mxu0 %v518
    %1302 = vmatpush1.msra.mxu0 %v517
    %1303 = vmatprep.subr.mxu0 %v529
    %1304 = vmatpush1.msra.mxu0 %v528
    %1305 = vmatprep.subr.mxu0 %v540
    %1306 = vmatpush1.msra.mxu0 %v539
    %1307 = vmatprep.subr.mxu0 %v551
    %1308 = vmatpush1.msra.mxu0 %v550
    %1309 = vmatprep.subr.mxu0 %v562
    %1310 = vmatpush1.msra.mxu0 %v561
    %1311 = vmatprep.subr.mxu0 %v573
    %1312 = vmatpush1.msra.mxu0 %v572
    %1313 = vmatprep.subr.mxu0 0.0
    %1314 = vmatpush1.msra.mxu0 0.0
    %1315 = vmatprep.subr.mxu0 0.0
    %1316 = vmatpush1.msra.mxu0 0.0
    %1317 = vmatprep.subr.mxu0 0.0
    %1318 = vmatpush1.msra.mxu0 0.0
    %1319 = vmatprep.subr.mxu0 0.0
    %1320 = vmatpush1.msra.mxu0 0.0
    %1321 = vmatprep.subr.mxu0 0.0
    %1322 = vmatpush1.msra.mxu0 0.0
    %1323 = vmatprep.subr.mxu0 0.0
    %1324 = vmatpush1.msra.mxu0 0.0
    %1325 = vmatprep.subr.mxu0 0.0
    %1326 = vmatpush1.msra.mxu0 0.0
    %1327 = vmatprep.subr.mxu0 0.0
    %1328 = vmatpush1.msra.mxu0 0.0
    %1329 = vmatprep.subr.mxu0 0.0
    %1330 = vmatpush1.msra.mxu0 0.0
    %1331 = vmatprep.subr.mxu0 0.0
    %1332 = vmatpush1.msra.mxu0 0.0
    %1333 = vmatprep.subr.mxu0 0.0
    %1334 = vmatpush1.msra.mxu0 0.0
    %1335 = vmatprep.subr.mxu0 0.0
    %1336 = vmatpush1.msra.mxu0 0.0
    %1337 = vmatprep.subr.mxu0 0.0
    %1338 = vmatpush1.msra.mxu0 0.0
    %1339 = vmatprep.subr.mxu0 0.0
    %1340 = vmatpush1.msra.mxu0 0.0
    %1341 = vmatprep.mubr.f32.mxu0 %v636
    %1342 = vmatmul.mubr.f32.gmra.mrb[0].mxu0 %v23
    %v1343 = vpop.f32.mrb[0].mxu0
    %v1344 = vadd.f32 %v1273, %v1343
    %v1345 = vpop.f32.mrb[0].mxu0
    %v1346 = vadd.f32 %v1275, %v1345
    %1347 = vdwg.mxu0
    %1348 = vmatprep.subr.mxu0 0.0
    %1349 = vmatpush1.msra.mxu0 %v35
    %1350 = vmatprep.subr.mxu0 0.0
    %1351 = vmatpush1.msra.mxu0 %v46
    %1352 = vmatprep.subr.mxu0 0.0
    %1353 = vmatpush1.msra.mxu0 %v57
    %1354 = vmatprep.subr.mxu0 0.0
    %1355 = vmatpush1.msra.mxu0 %v68
    %1356 = vmatprep.subr.mxu0 0.0
    %1357 = vmatpush1.msra.mxu0 %v79
    %1358 = vmatprep.subr.mxu0 0.0
    %1359 = vmatpush1.msra.mxu0 %v90
    %1360 = vmatprep.subr.mxu0 0.0
    %1361 = vmatpush1.msra.mxu0 %v101
    %1362 = vmatprep.subr.mxu0 0.0
    %1363 = vmatpush1.msra.mxu0 %v112
    %1364 = vmatprep.subr.mxu0 0.0
    %1365 = vmatpush1.msra.mxu0 %v123
    %1366 = vmatprep.subr.mxu0 0.0
    %1367 = vmatpush1.msra.mxu0 %v134
    %1368 = vmatprep.subr.mxu0 0.0
    %1369 = vmatpush1.msra.mxu0 %v145
    %1370 = vmatprep.subr.mxu0 0.0
    %1371 = vmatpush1.msra.mxu0 %v156
    %1372 = vmatprep.subr.mxu0 0.0
    %1373 = vmatpush1.msra.mxu0 %v167
    %1374 = vmatprep.subr.mxu0 0.0
    %1375 = vmatpush1.msra.mxu0 %v178
    %1376 = vmatprep.subr.mxu0 0.0
    %1377 = vmatpush1.msra.mxu0 %v189
    %1378 = vmatprep.subr.mxu0 0.0
    %1379 = vmatpush1.msra.mxu0 %v200
    %1380 = vmatprep.subr.mxu0 0.0
    %1381 = vmatpush1.msra.mxu0 %v211
    %1382 = vmatprep.subr.mxu0 0.0
    %1383 = vmatpush1.msra.mxu0 %v222
    %1384 = vmatprep.subr.mxu0 0.0
    %1385 = vmatpush1.msra.mxu0 %v233
    %1386 = vmatprep.subr.mxu0 0.0
    %1387 = vmatpush1.msra.mxu0 %v244
    %1388 = vmatprep.subr.mxu0 0.0
    %1389 = vmatpush1.msra.mxu0 %v255
    %1390 = vmatprep.subr.mxu0 0.0
    %1391 = vmatpush1.msra.mxu0 %v266
    %1392 = vmatprep.subr.mxu0 0.0
    %1393 = vmatpush1.msra.mxu0 %v277
    %1394 = vmatprep.subr.mxu0 0.0
    %1395 = vmatpush1.msra.mxu0 %v288
    %1396 = vmatprep.subr.mxu0 0.0
    %1397 = vmatpush1.msra.mxu0 %v299
    %1398 = vmatprep.subr.mxu0 0.0
    %1399 = vmatpush1.msra.mxu0 %v310
    %1400 = vmatprep.subr.mxu0 0.0
    %1401 = vmatpush1.msra.mxu0 %v321
    %1402 = vmatprep.subr.mxu0 0.0
    %1403 = vmatpush1.msra.mxu0 %v332
    %1404 = vmatprep.subr.mxu0 0.0
    %1405 = vmatpush1.msra.mxu0 %v343
    %1406 = vmatprep.subr.mxu0 0.0
    %1407 = vmatpush1.msra.mxu0 %v354
    %1408 = vmatprep.subr.mxu0 0.0
    %1409 = vmatpush1.msra.mxu0 %v365
    %1410 = vmatprep.subr.mxu0 0.0
    %1411 = vmatpush1.msra.mxu0 %v376
    %1412 = vmatprep.mubr.f32.mxu0 %v22
    %1413 = vmatmul.mubr.f32.gmra.mrb[0].mxu0 %v21
    %v1414 = vpop.f32.mrb[0].mxu0
    %v1415 = vadd.f32 %v622, %v1414
    %v1416 = vpop.f32.mrb[0].mxu0
    %1417 = vdwg.mxu0
    %1418 = vmatprep.subr.mxu0 0.0
    %1419 = vmatpush1.msra.mxu0 %v387
    %1420 = vmatprep.subr.mxu0 0.0
    %1421 = vmatpush1.msra.mxu0 %v398
    %1422 = vmatprep.subr.mxu0 0.0
    %1423 = vmatpush1.msra.mxu0 %v409
    %1424 = vmatprep.subr.mxu0 0.0
    %1425 = vmatpush1.msra.mxu0 %v420
    %1426 = vmatprep.subr.mxu0 0.0
    %1427 = vmatpush1.msra.mxu0 %v431
    %1428 = vmatprep.subr.mxu0 0.0
    %1429 = vmatpush1.msra.mxu0 %v442
    %1430 = vmatprep.subr.mxu0 0.0
    %1431 = vmatpush1.msra.mxu0 %v453
    %1432 = vmatprep.subr.mxu0 0.0
    %1433 = vmatpush1.msra.mxu0 %v464
    %1434 = vmatprep.subr.mxu0 0.0
    %1435 = vmatpush1.msra.mxu0 %v475
    %1436 = vmatprep.subr.mxu0 0.0
    %1437 = vmatpush1.msra.mxu0 %v486
    %1438 = vmatprep.subr.mxu0 0.0
    %1439 = vmatpush1.msra.mxu0 %v497
    %1440 = vmatprep.subr.mxu0 0.0
    %1441 = vmatpush1.msra.mxu0 %v508
    %1442 = vmatprep.subr.mxu0 0.0
    %1443 = vmatpush1.msra.mxu0 %v519
    %1444 = vmatprep.subr.mxu0 0.0
    %1445 = vmatpush1.msra.mxu0 %v530
    %1446 = vmatprep.subr.mxu0 0.0
    %1447 = vmatpush1.msra.mxu0 %v541
    %1448 = vmatprep.subr.mxu0 0.0
    %1449 = vmatpush1.msra.mxu0 %v552
    %1450 = vmatprep.subr.mxu0 0.0
    %1451 = vmatpush1.msra.mxu0 %v563
    %1452 = vmatprep.subr.mxu0 0.0
    %1453 = vmatpush1.msra.mxu0 %v574
    %1454 = vmatprep.subr.mxu0 0.0
    %1455 = vmatpush1.msra.mxu0 0.0
    %1456 = vmatprep.subr.mxu0 0.0
    %1457 = vmatpush1.msra.mxu0 0.0
    %1458 = vmatprep.subr.mxu0 0.0
    %1459 = vmatpush1.msra.mxu0 0.0
    %1460 = vmatprep.subr.mxu0 0.0
    %1461 = vmatpush1.msra.mxu0 0.0
    %1462 = vmatprep.subr.mxu0 0.0
    %1463 = vmatpush1.msra.mxu0 0.0
    %1464 = vmatprep.subr.mxu0 0.0
    %1465 = vmatpush1.msra.mxu0 0.0
    %1466 = vmatprep.subr.mxu0 0.0
    %1467 = vmatpush1.msra.mxu0 0.0
    %1468 = vmatprep.subr.mxu0 0.0
    %1469 = vmatpush1.msra.mxu0 0.0
    %1470 = vmatprep.subr.mxu0 0.0
    %1471 = vmatpush1.msra.mxu0 0.0
    %1472 = vmatprep.subr.mxu0 0.0
    %1473 = vmatpush1.msra.mxu0 0.0
    %1474 = vmatprep.subr.mxu0 0.0
    %1475 = vmatpush1.msra.mxu0 0.0
    %1476 = vmatprep.subr.mxu0 0.0
    %1477 = vmatpush1.msra.mxu0 0.0
    %1478 = vmatprep.subr.mxu0 0.0
    %1479 = vmatpush1.msra.mxu0 0.0
    %1480 = vmatprep.subr.mxu0 0.0
    %1481 = vmatpush1.msra.mxu0 0.0
    %1482 = vmatprep.mubr.f32.mxu0 %v636
    %1483 = vmatmul.mubr.f32.gmra.mrb[0].mxu0 %v23
    %v1484 = vpop.f32.mrb[0].mxu0
    %v1485 = vadd.f32 %v1415, %v1484
    %v1486 = vpop.f32.mrb[0].mxu0
    %1487 = vdwg.mxu0
    %v1488 = vmax.f32 %v776, 0.0
    %v1489 = vmax.f32 %v778, 0.0
    %v1490 = vmax.f32 %v918, 0.0
    %v1491 = vmax.f32 %v920, 0.0
    %v1492 = vmax.f32 %v1060, 0.0
    %v1493 = vmax.f32 %v1062, 0.0
    %v1494 = vmax.f32 %v1202, 0.0
    %v1495 = vmax.f32 %v1204, 0.0
    %v1496 = vmax.f32 %v1344, 0.0
    %v1497 = vmax.f32 %v1346, 0.0
    %v1498 = vmax.f32 %v1485, 0.0
    %v1499 = vld [vmem:[%s3] sm:$0xff]
    %v1500 = vld [vmem:[%s3 + $0x8] sm:$0xff]
    %v1501 = vld [vmem:[%s3 + $0x10] sm:$0xff]
    %v1502 = vld [vmem:[%s3 + $0x18] sm:$0xff]
    %v1503 = vld [vmem:[%s3 + $0x20] sm:$0xff]
    %v1504 = vld [vmem:[%s3 + $0x28] sm:$0xff]
    %v1505 = vld [vmem:[%s3 + $0x30] sm:$0xff]
    %v1506 = vld [vmem:[%s3 + $0x38] sm:$0xff]
    %v1507 = vld [vmem:[%s3 + $0x40] sm:$0xff]
    %v1508 = vld [vmem:[%s3 + $0x48] sm:$0xff]
    %v1509 = vld [vmem:[%s3 + $0x50] sm:$0xff]
    %v1510 = vld [vmem:[%s3 + $0x58] sm:$0xff]
    %v1511 = vld [vmem:[%s3 + $0x60] sm:$0xff]
    %v1512 = vld [vmem:[%s3 + $0x68] sm:$0xff]
    %v1513 = vld [vmem:[%s3 + $0x70] sm:$0xff]
    %v1514 = vld [vmem:[%s3 + $0x78] sm:$0xff]
    %v1515 = vld [vmem:[%s3 + $0x80] sm:$0xff]
    %v1516 = vld [vmem:[%s3 + $0x88] sm:$0xff]
    %v1517 = vld [vmem:[%s3 + $0x90] sm:$0xff]
    %v1518 = vld [vmem:[%s3 + $0x98] sm:$0xff]
    %v1519 = vld [vmem:[%s3 + $0xa0] sm:$0xff]
    %v1520 = vld [vmem:[%s3 + $0xa8] sm:$0xff]
    %v1521 = vld [vmem:[%s3 + $0xb0] sm:$0xff]
    %v1522 = vld [vmem:[%s3 + $0xb8] sm:$0xff]
    %v1523 = vld [vmem:[%s3 + $0xc0] sm:$0xff]
    %v1524 = vld [vmem:[%s3 + $0xc8] sm:$0xff]
    %v1525 = vld [vmem:[%s3 + $0xd0] sm:$0xff]
    %v1526 = vld [vmem:[%s3 + $0xd8] sm:$0xff]
    %v1527 = vld [vmem:[%s3 + $0xe0] sm:$0xff]
    %v1528 = vld [vmem:[%s3 + $0xe8] sm:$0xff]
    %v1529 = vld [vmem:[%s3 + $0xf0] sm:$0xff]
    %v1530 = vld [vmem:[%s3 + $0xf8] sm:$0xff]
    %v1531 = vld [vmem:[%s3 + $0x100] sm:$0xff]
    %v1532 = vld [vmem:[%s3 + $0x108] sm:$0xff]
    %v1533 = vld [vmem:[%s3 + $0x110] sm:$0xff]
    %v1534 = vld [vmem:[%s3 + $0x118] sm:$0xff]
    %v1535 = vld [vmem:[%s3 + $0x120] sm:$0xff]
    %v1536 = vld [vmem:[%s3 + $0x128] sm:$0xff]
    %v1537 = vld [vmem:[%s3 + $0x130] sm:$0xff]
    %v1538 = vld [vmem:[%s3 + $0x138] sm:$0xff]
    %v1539 = vld [vmem:[%s3 + $0x140] sm:$0xff]
    %v1540 = vld [vmem:[%s3 + $0x148] sm:$0xff]
    %v1541 = vld [vmem:[%s3 + $0x150] sm:$0xff]
    %v1542 = vld [vmem:[%s3 + $0x158] sm:$0xff]
    %v1543 = vld [vmem:[%s3 + $0x160] sm:$0xff]
    %v1544 = vld [vmem:[%s3 + $0x168] sm:$0xff]
    %v1545 = vld [vmem:[%s3 + $0x170] sm:$0xff]
    %v1546 = vld [vmem:[%s3 + $0x178] sm:$0xff]
    %v1547 = vld [vmem:[%s3 + $0x180] sm:$0xff]
    %v1548 = vld [vmem:[%s3 + $0x188] sm:$0xff]
    %v1549 = vld [vmem:[%s3 + $0x190] sm:$0xff]
    %v1550 = vld [vmem:[%s3 + $0x198] sm:$0xff]
    %v1551 = vld [vmem:[%s3 + $0x1a0] sm:$0xff]
    %v1552 = vld [vmem:[%s3 + $0x1a8] sm:$0xff]
    %v1553 = vld [vmem:[%s3 + $0x1b0] sm:$0xff]
    %v1554 = vld [vmem:[%s3 + $0x1b8] sm:$0xff]
    %v1555 = vld [vmem:[%s3 + $0x1c0] sm:$0xff]
    %v1556 = vld [vmem:[%s3 + $0x1c8] sm:$0xff]
    %v1557 = vld [vmem:[%s3 + $0x1d0] sm:$0xff]
    %v1558 = vld [vmem:[%s3 + $0x1d8] sm:$0xff]
    %v1559 = vld [vmem:[%s3 + $0x1e0] sm:$0xff]
    %v1560 = vld [vmem:[%s3 + $0x1e8] sm:$0xff]
    %v1561 = vld [vmem:[%s3 + $0x1f0] sm:$0xff]
    %v1562 = vld [vmem:[%s3 + $0x1f8] sm:$0xff]
    %v1563 = vld [vmem:[%s3 + $0x200] sm:$0xff]
    %v1564 = vld [vmem:[%s3 + $0x208] sm:$0xff]
    %v1565 = vld [vmem:[%s3 + $0x210] sm:$0xff]
    %v1566 = vld [vmem:[%s3 + $0x218] sm:$0xff]
    %v1567 = vld [vmem:[%s3 + $0x220] sm:$0xff]
    %v1568 = vld [vmem:[%s3 + $0x228] sm:$0xff]
    %v1569 = vld [vmem:[%s3 + $0x230] sm:$0xff]
    %v1570 = vld [vmem:[%s3 + $0x238] sm:$0xff]
    %v1571 = vld [vmem:[%s3 + $0x240] sm:$0xff]
    %v1572 = vld [vmem:[%s3 + $0x248] sm:$0xff]
    %v1573 = vld [vmem:[%s3 + $0x250] sm:$0xff]
    %v1574 = vld [vmem:[%s3 + $0x258] sm:$0xff]
    %v1575 = vld [vmem:[%s3 + $0x260] sm:$0xff]
    %v1576 = vld [vmem:[%s3 + $0x268] sm:$0xff]
    %v1577 = vld [vmem:[%s3 + $0x270] sm:$0xff]
    %v1578 = vld [vmem:[%s3 + $0x278] sm:$0xff]
    %v1579 = vld [vmem:[%s3 + $0x280] sm:$0xff]
    %v1580 = vld [vmem:[%s3 + $0x288] sm:$0xff]
    %v1581 = vld [vmem:[%s3 + $0x290] sm:$0xff]
    %v1582 = vld [vmem:[%s3 + $0x298] sm:$0xff]
    %v1583 = vld [vmem:[%s3 + $0x2a0] sm:$0xff]
    %v1584 = vld [vmem:[%s3 + $0x2a8] sm:$0xff]
    %v1585 = vld [vmem:[%s3 + $0x2b0] sm:$0xff]
    %v1586 = vld [vmem:[%s3 + $0x2b8] sm:$0xff]
    %v1587 = vld [vmem:[%s3 + $0x2c0] sm:$0xff]
    %v1588 = vld [vmem:[%s3 + $0x2c8] sm:$0xff]
    %v1589 = vld [vmem:[%s3 + $0x2d0] sm:$0xff]
    %v1590 = vld [vmem:[%s3 + $0x2d8] sm:$0xff]
    %v1591 = vld [vmem:[%s3 + $0x2e0] sm:$0xff]
    %v1592 = vld [vmem:[%s3 + $0x2e8] sm:$0xff]
    %v1593 = vld [vmem:[%s3 + $0x2f0] sm:$0xff]
    %v1594 = vld [vmem:[%s3 + $0x2f8] sm:$0xff]
    %v1595 = vld [vmem:[%s3 + $0x300] sm:$0xff]
    %v1596 = vld [vmem:[%s3 + $0x308] sm:$0xff]
    %v1597 = vld [vmem:[%s3 + $0x310] sm:$0xff]
    %v1598 = vld [vmem:[%s3 + $0x318] sm:$0xff]
    %v1599 = vld [vmem:[%s3 + $0x320] sm:$0xff]
    %v1600 = vld [vmem:[%s3 + $0x328] sm:$0xff]
    %v1601 = vld [vmem:[%s3 + $0x330] sm:$0xff]
    %v1602 = vld [vmem:[%s3 + $0x338] sm:$0xff]
    %v1603 = vld [vmem:[%s3 + $0x340] sm:$0xff]
    %v1604 = vld [vmem:[%s3 + $0x348] sm:$0xff]
    %v1605 = vld [vmem:[%s3 + $0x350] sm:$0xff]
    %v1606 = vld [vmem:[%s3 + $0x358] sm:$0xff]
    %v1607 = vld [vmem:[%s3 + $0x360] sm:$0xff]
    %v1608 = vld [vmem:[%s3 + $0x368] sm:$0xff]
    %v1609 = vld [vmem:[%s3 + $0x370] sm:$0xff]
    %v1610 = vld [vmem:[%s3 + $0x378] sm:$0xff]
    %v1611 = vld [vmem:[%s3 + $0x380] sm:$0xff]
    %v1612 = vld [vmem:[%s3 + $0x388] sm:$0xff]
    %v1613 = vld [vmem:[%s3 + $0x390] sm:$0xff]
    %v1614 = vld [vmem:[%s3 + $0x398] sm:$0xff]
    %v1615 = vld [vmem:[%s3 + $0x3a0] sm:$0xff]
    %v1616 = vld [vmem:[%s3 + $0x3a8] sm:$0xff]
    %v1617 = vld [vmem:[%s3 + $0x3b0] sm:$0xff]
    %v1618 = vld [vmem:[%s3 + $0x3b8] sm:$0xff]
    %v1619 = vld [vmem:[%s3 + $0x3c0] sm:$0xff]
    %v1620 = vld [vmem:[%s3 + $0x3c8] sm:$0xff]
    %v1621 = vld [vmem:[%s3 + $0x3d0] sm:$0xff]
    %v1622 = vld [vmem:[%s3 + $0x3d8] sm:$0xff]
    %v1623 = vld [vmem:[%s3 + $0x3e0] sm:$0xff]
    %v1624 = vld [vmem:[%s3 + $0x3e8] sm:$0xff]
    %v1625 = vld [vmem:[%s3 + $0x3f0] sm:$0xff]
    %v1626 = vld [vmem:[%s3 + $0x3f8] sm:$0xff]
    %v1627 = vld [vmem:[%s3 + $0x400] sm:$0xff]
    %v1628 = vld [vmem:[%s3 + $0x408] sm:$0xff]
    %v1629 = vld [vmem:[%s3 + $0x410] sm:$0xff]
    %v1630 = vld [vmem:[%s3 + $0x418] sm:$0xff]
    %v1631 = vld [vmem:[%s3 + $0x420] sm:$0xff]
    %v1632 = vld [vmem:[%s3 + $0x428] sm:$0xff]
    %v1633 = vld [vmem:[%s3 + $0x430] sm:$0xff]
    %v1634 = vld [vmem:[%s3 + $0x438] sm:$0xff]
    %v1635 = vld [vmem:[%s3 + $0x440] sm:$0xff]
    %v1636 = vld [vmem:[%s3 + $0x448] sm:$0xff]
    %v1637 = vld [vmem:[%s3 + $0x450] sm:$0xff]
    %v1638 = vld [vmem:[%s3 + $0x458] sm:$0xff]
    %v1639 = vld [vmem:[%s3 + $0x460] sm:$0xff]
    %v1640 = vld [vmem:[%s3 + $0x468] sm:$0xff]
    %v1641 = vld [vmem:[%s3 + $0x470] sm:$0xff]
    %v1642 = vld [vmem:[%s3 + $0x478] sm:$0xff]
    %v1643 = vld [vmem:[%s3 + $0x480] sm:$0xff]
    %v1644 = vld [vmem:[%s3 + $0x488] sm:$0xff]
    %v1645 = vld [vmem:[%s3 + $0x490] sm:$0xff]
    %v1646 = vld [vmem:[%s3 + $0x498] sm:$0xff]
    %v1647 = vld [vmem:[%s3 + $0x4a0] sm:$0xff]
    %v1648 = vld [vmem:[%s3 + $0x4a8] sm:$0xff]
    %v1649 = vld [vmem:[%s3 + $0x4b0] sm:$0xff]
    %v1650 = vld [vmem:[%s3 + $0x4b8] sm:$0xff]
    %v1651 = vld [vmem:[%s3 + $0x4c0] sm:$0xff]
    %v1652 = vld [vmem:[%s3 + $0x4c8] sm:$0xff]
    %v1653 = vld [vmem:[%s3 + $0x4d0] sm:$0xff]
    %v1654 = vld [vmem:[%s3 + $0x4d8] sm:$0xff]
    %v1655 = vld [vmem:[%s3 + $0x4e0] sm:$0xff]
    %v1656 = vld [vmem:[%s3 + $0x4e8] sm:$0xff]
    %v1657 = vld [vmem:[%s3 + $0x4f0] sm:$0xff]
    %v1658 = vld [vmem:[%s3 + $0x4f8] sm:$0xff]
    %v1659 = vld [vmem:[%s3 + $0x500] sm:$0xff]
    %v1660 = vld [vmem:[%s3 + $0x508] sm:$0xff]
    %v1661 = vld [vmem:[%s3 + $0x510] sm:$0xff]
    %v1662 = vld [vmem:[%s3 + $0x518] sm:$0xff]
    %v1663 = vld [vmem:[%s3 + $0x520] sm:$0xff]
    %v1664 = vld [vmem:[%s3 + $0x528] sm:$0xff]
    %v1665 = vld [vmem:[%s3 + $0x530] sm:$0xff]
    %v1666 = vld [vmem:[%s3 + $0x538] sm:$0xff]
    %v1667 = vld [vmem:[%s3 + $0x540] sm:$0xff]
    %v1668 = vld [vmem:[%s3 + $0x548] sm:$0xff]
    %v1669 = vld [vmem:[%s3 + $0x550] sm:$0xff]
    %v1670 = vld [vmem:[%s3 + $0x558] sm:$0xff]
    %v1671 = vld [vmem:[%s3 + $0x560] sm:$0xff]
    %v1672 = vld [vmem:[%s3 + $0x568] sm:$0xff]
    %v1673 = vld [vmem:[%s3 + $0x570] sm:$0xff]
    %v1674 = vld [vmem:[%s3 + $0x578] sm:$0xff]
    %v1675 = vld [vmem:[%s3 + $0x580] sm:$0xff]
    %v1676 = vld [vmem:[%s3 + $0x588] sm:$0xff]
    %v1677 = vld [vmem:[%s3 + $0x590] sm:$0xff]
    %v1678 = vld [vmem:[%s3 + $0x598] sm:$0xff]
    %v1679 = vld [vmem:[%s3 + $0x5a0] sm:$0xff]
    %v1680 = vld [vmem:[%s3 + $0x5a8] sm:$0xff]
    %v1681 = vld [vmem:[%s3 + $0x5b0] sm:$0xff]
    %v1682 = vld [vmem:[%s3 + $0x5b8] sm:$0xff]
    %v1683 = vld [vmem:[%s3 + $0x5c0] sm:$0xff]
    %v1684 = vld [vmem:[%s3 + $0x5c8] sm:$0xff]
    %v1685 = vld [vmem:[%s3 + $0x5d0] sm:$0xff]
    %v1686 = vld [vmem:[%s3 + $0x5d8] sm:$0xff]
    %v1687 = vld [vmem:[%s3 + $0x5e0] sm:$0xff]
    %v1688 = vld [vmem:[%s3 + $0x5e8] sm:$0xff]
    %v1689 = vld [vmem:[%s3 + $0x5f0] sm:$0xff]
    %v1690 = vld [vmem:[%s3 + $0x5f8] sm:$0xff]
    %v1691 = vld [vmem:[%s3 + $0x600] sm:$0xff]
    %v1692 = vld [vmem:[%s3 + $0x608] sm:$0xff]
    %v1693 = vld [vmem:[%s3 + $0x610] sm:$0xff]
    %v1694 = vld [vmem:[%s3 + $0x618] sm:$0xff]
    %v1695 = vld [vmem:[%s3 + $0x620] sm:$0xff]
    %v1696 = vld [vmem:[%s3 + $0x628] sm:$0xff]
    %v1697 = vld [vmem:[%s3 + $0x630] sm:$0xff]
    %v1698 = vld [vmem:[%s3 + $0x638] sm:$0xff]
    %v1699 = vld [vmem:[%s3 + $0x640] sm:$0xff]
    %v1700 = vld [vmem:[%s3 + $0x648] sm:$0xff]
    %v1701 = vld [vmem:[%s3 + $0x650] sm:$0xff]
    %v1702 = vld [vmem:[%s3 + $0x658] sm:$0xff]
    %v1703 = vld [vmem:[%s3 + $0x660] sm:$0xff]
    %v1704 = vld [vmem:[%s3 + $0x668] sm:$0xff]
    %v1705 = vld [vmem:[%s3 + $0x670] sm:$0xff]
    %v1706 = vld [vmem:[%s3 + $0x678] sm:$0xff]
    %v1707 = vld [vmem:[%s3 + $0x680] sm:$0xff]
    %v1708 = vld [vmem:[%s3 + $0x688] sm:$0xff]
    %v1709 = vld [vmem:[%s3 + $0x690] sm:$0xff]
    %v1710 = vld [vmem:[%s3 + $0x698] sm:$0xff]
    %v1711 = vld [vmem:[%s3 + $0x6a0] sm:$0xff]
    %v1712 = vld [vmem:[%s3 + $0x6a8] sm:$0xff]
    %v1713 = vld [vmem:[%s3 + $0x6b0] sm:$0xff]
    %v1714 = vld [vmem:[%s3 + $0x6b8] sm:$0xff]
    %v1715 = vld [vmem:[%s3 + $0x6c0] sm:$0xff]
    %v1716 = vld [vmem:[%s3 + $0x6c8] sm:$0xff]
    %v1717 = vld [vmem:[%s3 + $0x6d0] sm:$0xff]
    %v1718 = vld [vmem:[%s3 + $0x6d8] sm:$0xff]
    %v1719 = vld [vmem:[%s3 + $0x6e0] sm:$0xff]
    %v1720 = vld [vmem:[%s3 + $0x6e8] sm:$0xff]
    %v1721 = vld [vmem:[%s3 + $0x6f0] sm:$0xff]
    %v1722 = vld [vmem:[%s3 + $0x6f8] sm:$0xff]
    %v1723 = vld [vmem:[%s3 + $0x700] sm:$0xff]
    %v1724 = vld [vmem:[%s3 + $0x708] sm:$0xff]
    %v1725 = vld [vmem:[%s3 + $0x710] sm:$0xff]
    %v1726 = vld [vmem:[%s3 + $0x718] sm:$0xff]
    %v1727 = vld [vmem:[%s3 + $0x720] sm:$0xff]
    %v1728 = vld [vmem:[%s3 + $0x728] sm:$0xff]
    %v1729 = vld [vmem:[%s3 + $0x730] sm:$0xff]
    %v1730 = vld [vmem:[%s3 + $0x738] sm:$0xff]
    %v1731 = vld [vmem:[%s3 + $0x740] sm:$0xff]
    %v1732 = vld [vmem:[%s3 + $0x748] sm:$0xff]
    %v1733 = vld [vmem:[%s3 + $0x750] sm:$0xff]
    %v1734 = vld [vmem:[%s3 + $0x758] sm:$0xff]
    %v1735 = vld [vmem:[%s3 + $0x760] sm:$0xff]
    %v1736 = vld [vmem:[%s3 + $0x768] sm:$0xff]
    %v1737 = vld [vmem:[%s3 + $0x770] sm:$0xff]
    %v1738 = vld [vmem:[%s3 + $0x778] sm:$0xff]
    %v1739 = vld [vmem:[%s3 + $0x780] sm:$0xff]
    %v1740 = vld [vmem:[%s3 + $0x788] sm:$0xff]
    %v1741 = vld [vmem:[%s3 + $0x790] sm:$0xff]
    %v1742 = vld [vmem:[%s3 + $0x798] sm:$0xff]
    %v1743 = vld [vmem:[%s3 + $0x7a0] sm:$0xff]
    %v1744 = vld [vmem:[%s3 + $0x7a8] sm:$0xff]
    %v1745 = vld [vmem:[%s3 + $0x7b0] sm:$0xff]
    %v1746 = vld [vmem:[%s3 + $0x7b8] sm:$0xff]
    %v1747 = vld [vmem:[%s3 + $0x7c0] sm:$0xff]
    %v1748 = vld [vmem:[%s3 + $0x7c8] sm:$0xff]
    %v1749 = vld [vmem:[%s3 + $0x7d0] sm:$0xff]
    %v1750 = vld [vmem:[%s3 + $0x7d8] sm:$0xff]
    %v1751 = vld [vmem:[%s3 + $0x7e0] sm:$0xff]
    %v1752 = vld [vmem:[%s3 + $0x7e8] sm:$0xff]
    %v1753 = vld [vmem:[%s3 + $0x7f0] sm:$0xff]
    %v1754 = vld [vmem:[%s3 + $0x7f8] sm:$0xff]
    %v1755 = vld [vmem:[%s3 + $0x800] sm:$0xff]
    %v1756 = vld [vmem:[%s3 + $0x808] sm:$0xff]
    %v1757 = vld [vmem:[%s3 + $0x810] sm:$0xff]
    %v1758 = vld [vmem:[%s3 + $0x818] sm:$0xff]
    %v1759 = vld [vmem:[%s3 + $0x820] sm:$0xff]
    %v1760 = vld [vmem:[%s3 + $0x828] sm:$0xff]
    %v1761 = vld [vmem:[%s3 + $0x830] sm:$0xff]
    %v1762 = vld [vmem:[%s3 + $0x838] sm:$0xff]
    %v1763 = vld [vmem:[%s3 + $0x840] sm:$0xff]
    %v1764 = vld [vmem:[%s3 + $0x848] sm:$0xff]
    %v1765 = vld [vmem:[%s3 + $0x850] sm:$0xff]
    %v1766 = vld [vmem:[%s3 + $0x858] sm:$0xff]
    %v1767 = vld [vmem:[%s3 + $0x860] sm:$0xff]
    %v1768 = vld [vmem:[%s3 + $0x868] sm:$0xff]
    %v1769 = vld [vmem:[%s3 + $0x870] sm:$0xff]
    %v1770 = vld [vmem:[%s3 + $0x878] sm:$0xff]
    %v1771 = vld [vmem:[%s3 + $0x880] sm:$0xff]
    %v1772 = vld [vmem:[%s3 + $0x888] sm:$0xff]
    %v1773 = vld [vmem:[%s3 + $0x890] sm:$0xff]
    %v1774 = vld [vmem:[%s3 + $0x898] sm:$0xff]
    %v1775 = vld [vmem:[%s3 + $0x8a0] sm:$0xff]
    %v1776 = vld [vmem:[%s3 + $0x8a8] sm:$0xff]
    %v1777 = vld [vmem:[%s3 + $0x8b0] sm:$0xff]
    %v1778 = vld [vmem:[%s3 + $0x8b8] sm:$0xff]
    %v1779 = vld [vmem:[%s3 + $0x8c0] sm:$0xff]
    %v1780 = vld [vmem:[%s3 + $0x8c8] sm:$0xff]
    %v1781 = vld [vmem:[%s3 + $0x8d0] sm:$0xff]
    %v1782 = vld [vmem:[%s3 + $0x8d8] sm:$0xff]
    %v1783 = vld [vmem:[%s3 + $0x8e0] sm:$0xff]
    %v1784 = vld [vmem:[%s3 + $0x8e8] sm:$0xff]
    %v1785 = vld [vmem:[%s3 + $0x8f0] sm:$0xff]
    %v1786 = vld [vmem:[%s3 + $0x8f8] sm:$0xff]
    %v1787 = vld [vmem:[%s3 + $0x900] sm:$0xff]
    %v1788 = vld [vmem:[%s3 + $0x908] sm:$0xff]
    %v1789 = vld [vmem:[%s3 + $0x910] sm:$0xff]
    %v1790 = vld [vmem:[%s3 + $0x918] sm:$0xff]
    %v1791 = vld [vmem:[%s3 + $0x920] sm:$0xff]
    %v1792 = vld [vmem:[%s3 + $0x928] sm:$0xff]
    %v1793 = vld [vmem:[%s3 + $0x930] sm:$0xff]
    %v1794 = vld [vmem:[%s3 + $0x938] sm:$0xff]
    %v1795 = vld [vmem:[%s3 + $0x940] sm:$0xff]
    %v1796 = vld [vmem:[%s3 + $0x948] sm:$0xff]
    %v1797 = vld [vmem:[%s3 + $0x950] sm:$0xff]
    %v1798 = vld [vmem:[%s3 + $0x958] sm:$0xff]
    %v1799 = vld [vmem:[%s3 + $0x960] sm:$0xff]
    %v1800 = vld [vmem:[%s3 + $0x968] sm:$0xff]
    %v1801 = vld [vmem:[%s3 + $0x970] sm:$0xff]
    %v1802 = vld [vmem:[%s3 + $0x978] sm:$0xff]
    %v1803 = vld [vmem:[%s3 + $0x980] sm:$0xff]
    %v1804 = vld [vmem:[%s3 + $0x988] sm:$0xff]
    %v1805 = vld [vmem:[%s3 + $0x990] sm:$0xff]
    %v1806 = vld [vmem:[%s3 + $0x998] sm:$0xff]
    %v1807 = vld [vmem:[%s3 + $0x9a0] sm:$0xff]
    %v1808 = vld [vmem:[%s3 + $0x9a8] sm:$0xff]
    %v1809 = vld [vmem:[%s3 + $0x9b0] sm:$0xff]
    %v1810 = vld [vmem:[%s3 + $0x9b8] sm:$0xff]
    %v1811 = vld [vmem:[%s3 + $0x9c0] sm:$0xff]
    %v1812 = vld [vmem:[%s3 + $0x9c8] sm:$0xff]
    %v1813 = vld [vmem:[%s3 + $0x9d0] sm:$0xff]
    %v1814 = vld [vmem:[%s3 + $0x9d8] sm:$0xff]
    %v1815 = vld [vmem:[%s3 + $0x9e0] sm:$0xff]
    %v1816 = vld [vmem:[%s3 + $0x9e8] sm:$0xff]
    %v1817 = vld [vmem:[%s3 + $0x9f0] sm:$0xff]
    %v1818 = vld [vmem:[%s3 + $0x9f8] sm:$0xff]
    %v1819 = vld [vmem:[%s3 + $0xa00] sm:$0xff]
    %v1820 = vld [vmem:[%s3 + $0xa08] sm:$0xff]
    %v1821 = vld [vmem:[%s3 + $0xa10] sm:$0xff]
    %v1822 = vld [vmem:[%s3 + $0xa18] sm:$0xff]
    %v1823 = vld [vmem:[%s3 + $0xa20] sm:$0xff]
    %v1824 = vld [vmem:[%s3 + $0xa28] sm:$0xff]
    %v1825 = vld [vmem:[%s3 + $0xa30] sm:$0xff]
    %v1826 = vld [vmem:[%s3 + $0xa38] sm:$0xff]
    %v1827 = vld [vmem:[%s3 + $0xa40] sm:$0xff]
    %v1828 = vld [vmem:[%s3 + $0xa48] sm:$0xff]
    %v1829 = vld [vmem:[%s3 + $0xa50] sm:$0xff]
    %v1830 = vld [vmem:[%s3 + $0xa58] sm:$0xff]
    %v1831 = vld [vmem:[%s3 + $0xa60] sm:$0xff]
    %v1832 = vld [vmem:[%s3 + $0xa68] sm:$0xff]
    %v1833 = vld [vmem:[%s3 + $0xa70] sm:$0xff]
    %v1834 = vld [vmem:[%s3 + $0xa78] sm:$0xff]
    %v1835 = vld [vmem:[%s3 + $0xa80] sm:$0xff]
    %v1836 = vld [vmem:[%s3 + $0xa88] sm:$0xff]
    %v1837 = vld [vmem:[%s3 + $0xa90] sm:$0xff]
    %v1838 = vld [vmem:[%s3 + $0xa98] sm:$0xff]
    %v1839 = vld [vmem:[%s3 + $0xaa0] sm:$0xff]
    %v1840 = vld [vmem:[%s3 + $0xaa8] sm:$0xff]
    %v1841 = vld [vmem:[%s3 + $0xab0] sm:$0xff]
    %v1842 = vld [vmem:[%s3 + $0xab8] sm:$0xff]
    %v1843 = vld [vmem:[%s3 + $0xac0] sm:$0xff]
    %v1844 = vld [vmem:[%s3 + $0xac8] sm:$0xff]
    %v1845 = vld [vmem:[%s3 + $0xad0] sm:$0xff]
    %v1846 = vld [vmem:[%s3 + $0xad8] sm:$0xff]
    %v1847 = vld [vmem:[%s3 + $0xae0] sm:$0xff]
    %v1848 = vld [vmem:[%s3 + $0xae8] sm:$0xff]
    %v1849 = vld [vmem:[%s3 + $0xaf0] sm:$0xff]
    %v1850 = vld [vmem:[%s3 + $0xaf8] sm:$0xff]
    %v1851 = vld [vmem:[%s4] sm:$0x3]
    %v1853 = vlaneseq
    %v1854 = vshrl.u32 %v1853, 7
    %v1855 = vsub.s32 0, %v1854
    %v1856 = vrot.slane %v1851, %v1855
    %v1857 = vlaneseq
    %v1858 = vshrl.u32 %v1857, 7
    %v1859 = vsub.s32 1, %v1858
    %v1860 = vrot.slane %v1851, %v1859
    %1863 = vmatprep.subr.mxu0 %v1500
    %1864 = vmatpush1.msra.mxu0 %v1499
    %1865 = vmatprep.subr.mxu0 %v1502
    %1866 = vmatpush1.msra.mxu0 %v1501
    %1867 = vmatprep.subr.mxu0 %v1504
    %1868 = vmatpush1.msra.mxu0 %v1503
    %1869 = vmatprep.subr.mxu0 %v1506
    %1870 = vmatpush1.msra.mxu0 %v1505
    %1871 = vmatprep.subr.mxu0 %v1508
    %1872 = vmatpush1.msra.mxu0 %v1507
    %1873 = vmatprep.subr.mxu0 %v1510
    %1874 = vmatpush1.msra.mxu0 %v1509
    %1875 = vmatprep.subr.mxu0 %v1512
    %1876 = vmatpush1.msra.mxu0 %v1511
    %1877 = vmatprep.subr.mxu0 %v1514
    %1878 = vmatpush1.msra.mxu0 %v1513
    %1879 = vmatprep.subr.mxu0 %v1516
    %1880 = vmatpush1.msra.mxu0 %v1515
    %1881 = vmatprep.subr.mxu0 %v1518
    %1882 = vmatpush1.msra.mxu0 %v1517
    %1883 = vmatprep.subr.mxu0 %v1520
    %1884 = vmatpush1.msra.mxu0 %v1519
    %1885 = vmatprep.subr.mxu0 %v1522
    %1886 = vmatpush1.msra.mxu0 %v1521
    %1887 = vmatprep.subr.mxu0 %v1524
    %1888 = vmatpush1.msra.mxu0 %v1523
    %1889 = vmatprep.subr.mxu0 %v1526
    %1890 = vmatpush1.msra.mxu0 %v1525
    %1891 = vmatprep.subr.mxu0 %v1528
    %1892 = vmatpush1.msra.mxu0 %v1527
    %1893 = vmatprep.subr.mxu0 %v1530
    %1894 = vmatpush1.msra.mxu0 %v1529
    %1895 = vmatprep.subr.mxu0 %v1532
    %1896 = vmatpush1.msra.mxu0 %v1531
    %1897 = vmatprep.subr.mxu0 %v1534
    %1898 = vmatpush1.msra.mxu0 %v1533
    %1899 = vmatprep.subr.mxu0 %v1536
    %1900 = vmatpush1.msra.mxu0 %v1535
    %1901 = vmatprep.subr.mxu0 %v1538
    %1902 = vmatpush1.msra.mxu0 %v1537
    %1903 = vmatprep.subr.mxu0 %v1540
    %1904 = vmatpush1.msra.mxu0 %v1539
    %1905 = vmatprep.subr.mxu0 %v1542
    %1906 = vmatpush1.msra.mxu0 %v1541
    %1907 = vmatprep.subr.mxu0 %v1544
    %1908 = vmatpush1.msra.mxu0 %v1543
    %1909 = vmatprep.subr.mxu0 %v1546
    %1910 = vmatpush1.msra.mxu0 %v1545
    %1911 = vmatprep.subr.mxu0 %v1548
    %1912 = vmatpush1.msra.mxu0 %v1547
    %1913 = vmatprep.subr.mxu0 %v1550
    %1914 = vmatpush1.msra.mxu0 %v1549
    %1915 = vmatprep.subr.mxu0 %v1552
    %1916 = vmatpush1.msra.mxu0 %v1551
    %1917 = vmatprep.subr.mxu0 %v1554
    %1918 = vmatpush1.msra.mxu0 %v1553
    %1919 = vmatprep.subr.mxu0 %v1556
    %1920 = vmatpush1.msra.mxu0 %v1555
    %1921 = vmatprep.subr.mxu0 %v1558
    %1922 = vmatpush1.msra.mxu0 %v1557
    %1923 = vmatprep.subr.mxu0 %v1560
    %1924 = vmatpush1.msra.mxu0 %v1559
    %1925 = vmatprep.subr.mxu0 %v1562
    %1926 = vmatpush1.msra.mxu0 %v1561
    %1927 = vmatprep.mubr.f32.mxu0 %v1489
    %1928 = vmatmul.mubr.f32.gmra.mrb[0].mxu0 %v1488
    %v1929 = vpop.f32.mrb[0].mxu0
    %v1930 = vadd.f32 %v1856, %v1929
    %v1931 = vpop.f32.mrb[0].mxu0
    %v1932 = vadd.f32 %v1860, %v1931
    %1933 = vdwg.mxu0
    %1934 = vmatprep.subr.mxu0 %v1564
    %1935 = vmatpush1.msra.mxu0 %v1563
    %1936 = vmatprep.subr.mxu0 %v1566
    %1937 = vmatpush1.msra.mxu0 %v1565
    %1938 = vmatprep.subr.mxu0 %v1568
    %1939 = vmatpush1.msra.mxu0 %v1567
    %1940 = vmatprep.subr.mxu0 %v1570
    %1941 = vmatpush1.msra.mxu0 %v1569
    %1942 = vmatprep.subr.mxu0 %v1572
    %1943 = vmatpush1.msra.mxu0 %v1571
    %1944 = vmatprep.subr.mxu0 %v1574
    %1945 = vmatpush1.msra.mxu0 %v1573
    %1946 = vmatprep.subr.mxu0 %v1576
    %1947 = vmatpush1.msra.mxu0 %v1575
    %1948 = vmatprep.subr.mxu0 %v1578
    %1949 = vmatpush1.msra.mxu0 %v1577
    %1950 = vmatprep.subr.mxu0 %v1580
    %1951 = vmatpush1.msra.mxu0 %v1579
    %1952 = vmatprep.subr.mxu0 %v1582
    %1953 = vmatpush1.msra.mxu0 %v1581
    %1954 = vmatprep.subr.mxu0 %v1584
    %1955 = vmatpush1.msra.mxu0 %v1583
    %1956 = vmatprep.subr.mxu0 %v1586
    %1957 = vmatpush1.msra.mxu0 %v1585
    %1958 = vmatprep.subr.mxu0 %v1588
    %1959 = vmatpush1.msra.mxu0 %v1587
    %1960 = vmatprep.subr.mxu0 %v1590
    %1961 = vmatpush1.msra.mxu0 %v1589
    %1962 = vmatprep.subr.mxu0 %v1592
    %1963 = vmatpush1.msra.mxu0 %v1591
    %1964 = vmatprep.subr.mxu0 %v1594
    %1965 = vmatpush1.msra.mxu0 %v1593
    %1966 = vmatprep.subr.mxu0 %v1596
    %1967 = vmatpush1.msra.mxu0 %v1595
    %1968 = vmatprep.subr.mxu0 %v1598
    %1969 = vmatpush1.msra.mxu0 %v1597
    %1970 = vmatprep.subr.mxu0 %v1600
    %1971 = vmatpush1.msra.mxu0 %v1599
    %1972 = vmatprep.subr.mxu0 %v1602
    %1973 = vmatpush1.msra.mxu0 %v1601
    %1974 = vmatprep.subr.mxu0 %v1604
    %1975 = vmatpush1.msra.mxu0 %v1603
    %1976 = vmatprep.subr.mxu0 %v1606
    %1977 = vmatpush1.msra.mxu0 %v1605
    %1978 = vmatprep.subr.mxu0 %v1608
    %1979 = vmatpush1.msra.mxu0 %v1607
    %1980 = vmatprep.subr.mxu0 %v1610
    %1981 = vmatpush1.msra.mxu0 %v1609
    %1982 = vmatprep.subr.mxu0 %v1612
    %1983 = vmatpush1.msra.mxu0 %v1611
    %1984 = vmatprep.subr.mxu0 %v1614
    %1985 = vmatpush1.msra.mxu0 %v1613
    %1986 = vmatprep.subr.mxu0 %v1616
    %1987 = vmatpush1.msra.mxu0 %v1615
    %1988 = vmatprep.subr.mxu0 %v1618
    %1989 = vmatpush1.msra.mxu0 %v1617
    %1990 = vmatprep.subr.mxu0 %v1620
    %1991 = vmatpush1.msra.mxu0 %v1619
    %1992 = vmatprep.subr.mxu0 %v1622
    %1993 = vmatpush1.msra.mxu0 %v1621
    %1994 = vmatprep.subr.mxu0 %v1624
    %1995 = vmatpush1.msra.mxu0 %v1623
    %1996 = vmatprep.subr.mxu0 %v1626
    %1997 = vmatpush1.msra.mxu0 %v1625
    %1998 = vmatprep.mubr.f32.mxu0 %v1491
    %1999 = vmatmul.mubr.f32.gmra.mrb[0].mxu0 %v1490
    %v2000 = vpop.f32.mrb[0].mxu0
    %v2001 = vadd.f32 %v1930, %v2000
    %v2002 = vpop.f32.mrb[0].mxu0
    %v2003 = vadd.f32 %v1932, %v2002
    %2004 = vdwg.mxu0
    %2005 = vmatprep.subr.mxu0 %v1628
    %2006 = vmatpush1.msra.mxu0 %v1627
    %2007 = vmatprep.subr.mxu0 %v1630
    %2008 = vmatpush1.msra.mxu0 %v1629
    %2009 = vmatprep.subr.mxu0 %v1632
    %2010 = vmatpush1.msra.mxu0 %v1631
    %2011 = vmatprep.subr.mxu0 %v1634
    %2012 = vmatpush1.msra.mxu0 %v1633
    %2013 = vmatprep.subr.mxu0 %v1636
    %2014 = vmatpush1.msra.mxu0 %v1635
    %2015 = vmatprep.subr.mxu0 %v1638
    %2016 = vmatpush1.msra.mxu0 %v1637
    %2017 = vmatprep.subr.mxu0 %v1640
    %2018 = vmatpush1.msra.mxu0 %v1639
    %2019 = vmatprep.subr.mxu0 %v1642
    %2020 = vmatpush1.msra.mxu0 %v1641
    %2021 = vmatprep.subr.mxu0 %v1644
    %2022 = vmatpush1.msra.mxu0 %v1643
    %2023 = vmatprep.subr.mxu0 %v1646
    %2024 = vmatpush1.msra.mxu0 %v1645
    %2025 = vmatprep.subr.mxu0 %v1648
    %2026 = vmatpush1.msra.mxu0 %v1647
    %2027 = vmatprep.subr.mxu0 %v1650
    %2028 = vmatpush1.msra.mxu0 %v1649
    %2029 = vmatprep.subr.mxu0 %v1652
    %2030 = vmatpush1.msra.mxu0 %v1651
    %2031 = vmatprep.subr.mxu0 %v1654
    %2032 = vmatpush1.msra.mxu0 %v1653
    %2033 = vmatprep.subr.mxu0 %v1656
    %2034 = vmatpush1.msra.mxu0 %v1655
    %2035 = vmatprep.subr.mxu0 %v1658
    %2036 = vmatpush1.msra.mxu0 %v1657
    %2037 = vmatprep.subr.mxu0 %v1660
    %2038 = vmatpush1.msra.mxu0 %v1659
    %2039 = vmatprep.subr.mxu0 %v1662
    %2040 = vmatpush1.msra.mxu0 %v1661
    %2041 = vmatprep.subr.mxu0 %v1664
    %2042 = vmatpush1.msra.mxu0 %v1663
    %2043 = vmatprep.subr.mxu0 %v1666
    %2044 = vmatpush1.msra.mxu0 %v1665
    %2045 = vmatprep.subr.mxu0 %v1668
    %2046 = vmatpush1.msra.mxu0 %v1667
    %2047 = vmatprep.subr.mxu0 %v1670
    %2048 = vmatpush1.msra.mxu0 %v1669
    %2049 = vmatprep.subr.mxu0 %v1672
    %2050 = vmatpush1.msra.mxu0 %v1671
    %2051 = vmatprep.subr.mxu0 %v1674
    %2052 = vmatpush1.msra.mxu0 %v1673
    %2053 = vmatprep.subr.mxu0 %v1676
    %2054 = vmatpush1.msra.mxu0 %v1675
    %2055 = vmatprep.subr.mxu0 %v1678
    %2056 = vmatpush1.msra.mxu0 %v1677
    %2057 = vmatprep.subr.mxu0 %v1680
    %2058 = vmatpush1.msra.mxu0 %v1679
    %2059 = vmatprep.subr.mxu0 %v1682
    %2060 = vmatpush1.msra.mxu0 %v1681
    %2061 = vmatprep.subr.mxu0 %v1684
    %2062 = vmatpush1.msra.mxu0 %v1683
    %2063 = vmatprep.subr.mxu0 %v1686
    %2064 = vmatpush1.msra.mxu0 %v1685
    %2065 = vmatprep.subr.mxu0 %v1688
    %2066 = vmatpush1.msra.mxu0 %v1687
    %2067 = vmatprep.subr.mxu0 %v1690
    %2068 = vmatpush1.msra.mxu0 %v1689
    %2069 = vmatprep.mubr.f32.mxu0 %v1493
    %2070 = vmatmul.mubr.f32.gmra.mrb[0].mxu0 %v1492
    %v2071 = vpop.f32.mrb[0].mxu0
    %v2072 = vadd.f32 %v2001, %v2071
    %v2073 = vpop.f32.mrb[0].mxu0
    %v2074 = vadd.f32 %v2003, %v2073
    %2075 = vdwg.mxu0
    %2076 = vmatprep.subr.mxu0 %v1692
    %2077 = vmatpush1.msra.mxu0 %v1691
    %2078 = vmatprep.subr.mxu0 %v1694
    %2079 = vmatpush1.msra.mxu0 %v1693
    %2080 = vmatprep.subr.mxu0 %v1696
    %2081 = vmatpush1.msra.mxu0 %v1695
    %2082 = vmatprep.subr.mxu0 %v1698
    %2083 = vmatpush1.msra.mxu0 %v1697
    %2084 = vmatprep.subr.mxu0 %v1700
    %2085 = vmatpush1.msra.mxu0 %v1699
    %2086 = vmatprep.subr.mxu0 %v1702
    %2087 = vmatpush1.msra.mxu0 %v1701
    %2088 = vmatprep.subr.mxu0 %v1704
    %2089 = vmatpush1.msra.mxu0 %v1703
    %2090 = vmatprep.subr.mxu0 %v1706
    %2091 = vmatpush1.msra.mxu0 %v1705
    %2092 = vmatprep.subr.mxu0 %v1708
    %2093 = vmatpush1.msra.mxu0 %v1707
    %2094 = vmatprep.subr.mxu0 %v1710
    %2095 = vmatpush1.msra.mxu0 %v1709
    %2096 = vmatprep.subr.mxu0 %v1712
    %2097 = vmatpush1.msra.mxu0 %v1711
    %2098 = vmatprep.subr.mxu0 %v1714
    %2099 = vmatpush1.msra.mxu0 %v1713
    %2100 = vmatprep.subr.mxu0 %v1716
    %2101 = vmatpush1.msra.mxu0 %v1715
    %2102 = vmatprep.subr.mxu0 %v1718
    %2103 = vmatpush1.msra.mxu0 %v1717
    %2104 = vmatprep.subr.mxu0 %v1720
    %2105 = vmatpush1.msra.mxu0 %v1719
    %2106 = vmatprep.subr.mxu0 %v1722
    %2107 = vmatpush1.msra.mxu0 %v1721
    %2108 = vmatprep.subr.mxu0 %v1724
    %2109 = vmatpush1.msra.mxu0 %v1723
    %2110 = vmatprep.subr.mxu0 %v1726
    %2111 = vmatpush1.msra.mxu0 %v1725
    %2112 = vmatprep.subr.mxu0 %v1728
    %2113 = vmatpush1.msra.mxu0 %v1727
    %2114 = vmatprep.subr.mxu0 %v1730
    %2115 = vmatpush1.msra.mxu0 %v1729
    %2116 = vmatprep.subr.mxu0 %v1732
    %2117 = vmatpush1.msra.mxu0 %v1731
    %2118 = vmatprep.subr.mxu0 %v1734
    %2119 = vmatpush1.msra.mxu0 %v1733
    %2120 = vmatprep.subr.mxu0 %v1736
    %2121 = vmatpush1.msra.mxu0 %v1735
    %2122 = vmatprep.subr.mxu0 %v1738
    %2123 = vmatpush1.msra.mxu0 %v1737
    %2124 = vmatprep.subr.mxu0 %v1740
    %2125 = vmatpush1.msra.mxu0 %v1739
    %2126 = vmatprep.subr.mxu0 %v1742
    %2127 = vmatpush1.msra.mxu0 %v1741
    %2128 = vmatprep.subr.mxu0 %v1744
    %2129 = vmatpush1.msra.mxu0 %v1743
    %2130 = vmatprep.subr.mxu0 %v1746
    %2131 = vmatpush1.msra.mxu0 %v1745
    %2132 = vmatprep.subr.mxu0 %v1748
    %2133 = vmatpush1.msra.mxu0 %v1747
    %2134 = vmatprep.subr.mxu0 %v1750
    %2135 = vmatpush1.msra.mxu0 %v1749
    %2136 = vmatprep.subr.mxu0 %v1752
    %2137 = vmatpush1.msra.mxu0 %v1751
    %2138 = vmatprep.subr.mxu0 %v1754
    %2139 = vmatpush1.msra.mxu0 %v1753
    %2140 = vmatprep.mubr.f32.mxu0 %v1495
    %2141 = vmatmul.mubr.f32.gmra.mrb[0].mxu0 %v1494
    %v2142 = vpop.f32.mrb[0].mxu0
    %v2143 = vadd.f32 %v2072, %v2142
    %v2144 = vpop.f32.mrb[0].mxu0
    %v2145 = vadd.f32 %v2074, %v2144
    %2146 = vdwg.mxu0
    %2147 = vmatprep.subr.mxu0 %v1756
    %2148 = vmatpush1.msra.mxu0 %v1755
    %2149 = vmatprep.subr.mxu0 %v1758
    %2150 = vmatpush1.msra.mxu0 %v1757
    %2151 = vmatprep.subr.mxu0 %v1760
    %2152 = vmatpush1.msra.mxu0 %v1759
    %2153 = vmatprep.subr.mxu0 %v1762
    %2154 = vmatpush1.msra.mxu0 %v1761
    %2155 = vmatprep.subr.mxu0 %v1764
    %2156 = vmatpush1.msra.mxu0 %v1763
    %2157 = vmatprep.subr.mxu0 %v1766
    %2158 = vmatpush1.msra.mxu0 %v1765
    %2159 = vmatprep.subr.mxu0 %v1768
    %2160 = vmatpush1.msra.mxu0 %v1767
    %2161 = vmatprep.subr.mxu0 %v1770
    %2162 = vmatpush1.msra.mxu0 %v1769
    %2163 = vmatprep.subr.mxu0 %v1772
    %2164 = vmatpush1.msra.mxu0 %v1771
    %2165 = vmatprep.subr.mxu0 %v1774
    %2166 = vmatpush1.msra.mxu0 %v1773
    %2167 = vmatprep.subr.mxu0 %v1776
    %2168 = vmatpush1.msra.mxu0 %v1775
    %2169 = vmatprep.subr.mxu0 %v1778
    %2170 = vmatpush1.msra.mxu0 %v1777
    %2171 = vmatprep.subr.mxu0 %v1780
    %2172 = vmatpush1.msra.mxu0 %v1779
    %2173 = vmatprep.subr.mxu0 %v1782
    %2174 = vmatpush1.msra.mxu0 %v1781
    %2175 = vmatprep.subr.mxu0 %v1784
    %2176 = vmatpush1.msra.mxu0 %v1783
    %2177 = vmatprep.subr.mxu0 %v1786
    %2178 = vmatpush1.msra.mxu0 %v1785
    %2179 = vmatprep.subr.mxu0 %v1788
    %2180 = vmatpush1.msra.mxu0 %v1787
    %2181 = vmatprep.subr.mxu0 %v1790
    %2182 = vmatpush1.msra.mxu0 %v1789
    %2183 = vmatprep.subr.mxu0 %v1792
    %2184 = vmatpush1.msra.mxu0 %v1791
    %2185 = vmatprep.subr.mxu0 %v1794
    %2186 = vmatpush1.msra.mxu0 %v1793
    %2187 = vmatprep.subr.mxu0 %v1796
    %2188 = vmatpush1.msra.mxu0 %v1795
    %2189 = vmatprep.subr.mxu0 %v1798
    %2190 = vmatpush1.msra.mxu0 %v1797
    %2191 = vmatprep.subr.mxu0 %v1800
    %2192 = vmatpush1.msra.mxu0 %v1799
    %2193 = vmatprep.subr.mxu0 %v1802
    %2194 = vmatpush1.msra.mxu0 %v1801
    %2195 = vmatprep.subr.mxu0 %v1804
    %2196 = vmatpush1.msra.mxu0 %v1803
    %2197 = vmatprep.subr.mxu0 %v1806
    %2198 = vmatpush1.msra.mxu0 %v1805
    %2199 = vmatprep.subr.mxu0 %v1808
    %2200 = vmatpush1.msra.mxu0 %v1807
    %2201 = vmatprep.subr.mxu0 %v1810
    %2202 = vmatpush1.msra.mxu0 %v1809
    %2203 = vmatprep.subr.mxu0 %v1812
    %2204 = vmatpush1.msra.mxu0 %v1811
    %2205 = vmatprep.subr.mxu0 %v1814
    %2206 = vmatpush1.msra.mxu0 %v1813
    %2207 = vmatprep.subr.mxu0 %v1816
    %2208 = vmatpush1.msra.mxu0 %v1815
    %2209 = vmatprep.subr.mxu0 %v1818
    %2210 = vmatpush1.msra.mxu0 %v1817
    %2211 = vmatprep.mubr.f32.mxu0 %v1497
    %2212 = vmatmul.mubr.f32.gmra.mrb[0].mxu0 %v1496
    %v2213 = vpop.f32.mrb[0].mxu0
    %v2214 = vadd.f32 %v2143, %v2213
    %v2215 = vpop.f32.mrb[0].mxu0
    %v2216 = vadd.f32 %v2145, %v2215
    %2217 = vdwg.mxu0
    %2218 = vmatprep.subr.mxu0 %v1820
    %2219 = vmatpush1.msra.mxu0 %v1819
    %2220 = vmatprep.subr.mxu0 %v1822
    %2221 = vmatpush1.msra.mxu0 %v1821
    %2222 = vmatprep.subr.mxu0 %v1824
    %2223 = vmatpush1.msra.mxu0 %v1823
    %2224 = vmatprep.subr.mxu0 %v1826
    %2225 = vmatpush1.msra.mxu0 %v1825
    %2226 = vmatprep.subr.mxu0 %v1828
    %2227 = vmatpush1.msra.mxu0 %v1827
    %2228 = vmatprep.subr.mxu0 %v1830
    %2229 = vmatpush1.msra.mxu0 %v1829
    %2230 = vmatprep.subr.mxu0 %v1832
    %2231 = vmatpush1.msra.mxu0 %v1831
    %2232 = vmatprep.subr.mxu0 %v1834
    %2233 = vmatpush1.msra.mxu0 %v1833
    %2234 = vmatprep.subr.mxu0 %v1836
    %2235 = vmatpush1.msra.mxu0 %v1835
    %2236 = vmatprep.subr.mxu0 %v1838
    %2237 = vmatpush1.msra.mxu0 %v1837
    %2238 = vmatprep.subr.mxu0 %v1840
    %2239 = vmatpush1.msra.mxu0 %v1839
    %2240 = vmatprep.subr.mxu0 %v1842
    %2241 = vmatpush1.msra.mxu0 %v1841
    %2242 = vmatprep.subr.mxu0 %v1844
    %2243 = vmatpush1.msra.mxu0 %v1843
    %2244 = vmatprep.subr.mxu0 %v1846
    %2245 = vmatpush1.msra.mxu0 %v1845
    %2246 = vmatprep.subr.mxu0 %v1848
    %2247 = vmatpush1.msra.mxu0 %v1847
    %2248 = vmatprep.subr.mxu0 %v1850
    %2249 = vmatpush1.msra.mxu0 %v1849
    %2250 = vmatprep.subr.mxu0 0.0
    %2251 = vmatpush1.msra.mxu0 0.0
    %2252 = vmatprep.subr.mxu0 0.0
    %2253 = vmatpush1.msra.mxu0 0.0
    %2254 = vmatprep.subr.mxu0 0.0
    %2255 = vmatpush1.msra.mxu0 0.0
    %2256 = vmatprep.subr.mxu0 0.0
    %2257 = vmatpush1.msra.mxu0 0.0
    %2258 = vmatprep.subr.mxu0 0.0
    %2259 = vmatpush1.msra.mxu0 0.0
    %2260 = vmatprep.subr.mxu0 0.0
    %2261 = vmatpush1.msra.mxu0 0.0
    %2262 = vmatprep.subr.mxu0 0.0
    %2263 = vmatpush1.msra.mxu0 0.0
    %2264 = vmatprep.subr.mxu0 0.0
    %2265 = vmatpush1.msra.mxu0 0.0
    %2266 = vmatprep.subr.mxu0 0.0
    %2267 = vmatpush1.msra.mxu0 0.0
    %2268 = vmatprep.subr.mxu0 0.0
    %2269 = vmatpush1.msra.mxu0 0.0
    %2270 = vmatprep.subr.mxu0 0.0
    %2271 = vmatpush1.msra.mxu0 0.0
    %2272 = vmatprep.subr.mxu0 0.0
    %2273 = vmatpush1.msra.mxu0 0.0
    %2274 = vmatprep.subr.mxu0 0.0
    %2275 = vmatpush1.msra.mxu0 0.0
    %2276 = vmatprep.subr.mxu0 0.0
    %2277 = vmatpush1.msra.mxu0 0.0
    %2278 = vmatprep.subr.mxu0 0.0
    %2279 = vmatpush1.msra.mxu0 0.0
    %2280 = vmatprep.subr.mxu0 0.0
    %2281 = vmatpush1.msra.mxu0 0.0
    %2282 = vmatprep.mubr.f32.mxu0 0.0
    %2283 = vmatmul.mubr.f32.gmra.mrb[0].mxu0 %v1498
    %v2284 = vpop.f32.mrb[0].mxu0
    %v2285 = vadd.f32 %v2214, %v2284
    %v2286 = vpop.f32.mrb[0].mxu0
    %v2287 = vadd.f32 %v2216, %v2286
    %2288 = vdwg.mxu0
    %v2289 = vmax.f32 %v2285, 0.0
    %v2290 = vmax.f32 %v2287, 0.0
    %2291 = vst [vmem:[#allocation2] sm:$0xff] %v2289
    %vm2292 = vcmask 588800
    %2293 = vst.msk [vmem:[#allocation2 + $0x8] sm:$0xff] %vm2292, %v2290
    // Predicated region
    $region22: #{tpu_custom_call.1} parent=1 // pred_check
      _
    $region23: #{tpu_custom_call.1} parent=1 // pred_check_branch
      %2295 = sbr.rel (0) target = $region25
    $region24: #{tpu_custom_call.1} parent=1 // pred_region
      %s2297 = ssub.s32 256, 256
      %2298 = vsyncadd [#allocation3], %s2297
      %s2300 = sshll.u32 [#allocation2], 4
      %s2301 = int_to_ptr.vmem [resolvable:$true] %s2300
      %2303 = dma.vmem_to_hbm [thread:$0]  %s2301, 256, %s5, [#allocation3]
    $region25: #{tpu_custom_call.1} parent=1 // pred_fallthru
      _
    // Predicated region
    $region26: #{tpu_custom_call.1} parent=1 // pred_check
      _
    $region27: #{tpu_custom_call.1} parent=1 // pred_check_branch
      %2305 = sbr.rel (0) target = $region29
    $region28: #{tpu_custom_call.1} parent=1 // pred_region
      %2306 = dma.done [#allocation3], 256
    $region29: #{tpu_custom_call.1} parent=1 // pred_fallthru
      _
    %2307 = vsyncpa [#allocation3], 1

</llo_original>
